<compile_context>
chip_gen: v7x
topology: tpu7x:2x2x1
jax: 0.10.0
libtpu: 0.0.40
codegen_flags: <defaults>
</compile_context>

<pallas_src>
import math

import jax
import jax.numpy as jnp
from jax.experimental import pallas as pl
from jax.experimental.pallas import tpu as pltpu

EPS = 1e-5
LANE = 128                          # lane width: K / Cout padded to multiples
MXU_DTYPE = jnp.bfloat16            # MXU operands + HBM intermediates (f32 acc)
RESIDENT_W_SINGLE_BUFFER_BYTES = 4 * 1024 * 1024   # single-buffer big weights


def _vmem_capacity_bytes():
    try:
        cap = getattr(pltpu.get_tpu_info(), "vmem_capacity_bytes", None)
        if cap:
            return int(cap)
    except Exception:
        pass
    return 64 * 1024 * 1024         # conservative fallback (v7x-sized)


_VMEM_CAP = _vmem_capacity_bytes()
# ~44 MiB on 64-MiB-VMEM parts (v7x), ~100 MiB on 128-MiB parts (v5e / v6e).
VMEM_LIMIT_BYTES = max(32 * 1024 * 1024,
                       min(_VMEM_CAP - 20 * 1024 * 1024, 100 * 1024 * 1024))
MAX_TILE_M = 1024 if _VMEM_CAP >= 100 * 1024 * 1024 else 512

_COMPILER_PARAMS = pltpu.CompilerParams(
    dimension_semantics=("parallel",),
    vmem_limit_bytes=VMEM_LIMIT_BYTES,
)


# ----------------------------------------------------------------------------
# small helpers
# ----------------------------------------------------------------------------
def _round_up(x, m):
    return (x + m - 1) // m * m


def _pad2d(a, rows, cols):
    r, c = a.shape
    return jnp.pad(a, ((0, rows - r), (0, cols - c)))


def _pick_tile_m(m):
    # Guarantee >=2 grid steps whenever possible so the "parallel" M axis can
    # feed both v7x TensorCores; negligible overhead on single-TC v5e/v6e.
    if m <= 2 * MAX_TILE_M:
        tm = _round_up(-(-m // 2), 16)
    else:
        tm = MAX_TILE_M
    return max(tm, 16)


def _im2col(x_nhwc, ksize, stride, padding):
    """(N*Ho*Wo, k*k*Cin) patch matrix; rows (N,Ho,Wo)-ordered, cols (kh,kw,ci)."""
    n, h, w, c = x_nhwc.shape
    xp = jnp.pad(x_nhwc, ((0, 0), (padding, padding), (padding, padding), (0, 0)))
    ho = (h + 2 * padding - ksize) // stride + 1
    wo = (w + 2 * padding - ksize) // stride + 1
    cols = []
    for kh in range(ksize):
        for kw in range(ksize):
            cols.append(xp[:, kh:kh + stride * ho:stride,
                           kw:kw + stride * wo:stride, :])
    a = jnp.concatenate(cols, axis=-1)                    # (N, Ho, Wo, k*k*C)
    return a.reshape(n * ho * wo, ksize * ksize * c)


def _weight_to_matrix(w_oihw):
    # (Cout, Cin, kh, kw) -> (kh*kw*Cin, Cout), matching im2col column order.
    cout, cin, kh, kw = w_oihw.shape
    return jnp.transpose(w_oihw, (2, 3, 1, 0)).reshape(kh * kw * cin, cout)


# ----------------------------------------------------------------------------
# Pallas kernel 1: tiled matmul (bf16 MXU, f32 acc) + per-tile BN statistics
#   emit_conv=False -> stats-only pass (used for the 1x1 projection shortcut,
#   whose conv is recomputed inside the final fused kernel -> no HBM round trip)
# ----------------------------------------------------------------------------
def _matmul_stats_pallas(a_pad, w_pad, tile_m, *, emit_conv=True):
    m_pad, k_pad = a_pad.shape
    cp = w_pad.shape[1]
    num_tiles = m_pad // tile_m

    def kernel(a_ref, w_ref, *out_refs):
        conv = jnp.dot(a_ref[...], w_ref[...],
                       preferred_element_type=jnp.float32)      # (tile_m, cp)
        if emit_conv:
            conv_ref, psum_ref, psumsq_ref = out_refs
            conv_ref[...] = conv.astype(conv_ref.dtype)          # bf16 store
        else:
            psum_ref, psumsq_ref = out_refs
        # Per-tile partial BN statistics folded to one (8, cp) block.
        # Each grid step writes a distinct block -> grid stays "parallel".
        c3 = conv.reshape(tile_m // 8, 8, cp)
        psum_ref[...] = jnp.sum(c3, axis=0)
        psumsq_ref[...] = jnp.sum(c3 * c3, axis=0)

    # Resident weights have a constant index_map; single-buffer them when
    # large so two copies do not blow the 64-MiB v7x VMEM budget.
    w_bytes = k_pad * cp * w_pad.dtype.itemsize
    w_kwargs = {}
    if w_bytes >= RESIDENT_W_SINGLE_BUFFER_BYTES:
        w_kwargs["pipeline_mode"] = pl.Buffered(buffer_count=1)
    in_specs = [
        pl.BlockSpec((tile_m, k_pad), lambda i: (i, 0)),         # A row tile
        pl.BlockSpec((k_pad, cp), lambda i: (0, 0), **w_kwargs), # resident W
    ]

    out_specs, out_shape = [], []
    if emit_conv:
        out_specs.append(pl.BlockSpec((tile_m, cp), lambda i: (i, 0)))
        out_shape.append(jax.ShapeDtypeStruct((m_pad, cp), MXU_DTYPE))
    out_specs += [pl.BlockSpec((8, cp), lambda i: (i, 0))] * 2
    out_shape += [jax.ShapeDtypeStruct((num_tiles * 8, cp), jnp.float32)] * 2

    out_bytes = sum(math.prod(s.shape) * jnp.dtype(s.dtype).itemsize
                    for s in out_shape)
    cost = pl.CostEstimate(
        flops=2 * m_pad * k_pad * cp,
        transcendentals=0,
        bytes_accessed=int(a_pad.size * a_pad.dtype.itemsize + w_bytes + out_bytes),
    )

    outs = pl.pallas_call(
        kernel,
        grid=(num_tiles,),
        in_specs=in_specs,
        out_specs=out_specs,
        out_shape=out_shape,
        compiler_params=_COMPILER_PARAMS,
        cost_estimate=cost,
    )(a_pad, w_pad)

    if emit_conv:
        conv, psum, psumsq = outs
    else:
        conv, (psum, psumsq) = None, outs
    # Tiny global reduction over tiles happens in plain JAX.
    return conv, jnp.sum(psum, axis=0), jnp.sum(psumsq, axis=0)


# ----------------------------------------------------------------------------
# BN finalize (tiny, plain JAX): global mean/var -> per-channel scale/bias
# ----------------------------------------------------------------------------
def _bn_affine(csum, csumsq, m_real, gamma, beta, cp):
    # TODO(synk): E[x^2]-E[x]^2 in f32 can cancel for large-mean activations;
    # switch to a centered / Welford pass if these stats feed training grads.
    mean = csum / m_real
    var = jnp.maximum(csumsq / m_real - mean * mean, 0.0)
    g = jnp.pad(gamma.astype(jnp.float32), (0, cp - gamma.shape[0]))
    b = jnp.pad(beta.astype(jnp.float32), (0, cp - beta.shape[0]))
    scale = g * jax.lax.rsqrt(var + EPS)
    bias = b - mean * scale
    return scale.reshape(1, cp), bias.reshape(1, cp)


# ----------------------------------------------------------------------------
# Pallas kernel 2: final fusion
#   out = relu( conv2*s2 + b2 + shortcut )
#   shortcut = (A_s @ Ws)*ss + bs   (projection, recomputed in-kernel)
#            |  residual            (identity, bf16 read, f32 math)
# ----------------------------------------------------------------------------
def _finalize_pallas(conv2, s2, b2, tile_m, *,
                     sc_a=None, sc_w=None, sc_s=None, sc_b=None, residual=None):
    m_pad, cp = conv2.shape
    num_tiles = m_pad // tile_m
    row_spec = pl.BlockSpec((tile_m, cp), lambda i: (i, 0))
    vec_spec = pl.BlockSpec((1, cp), lambda i: (0, 0))           # lane-dense row

    if sc_a is not None:
        cin_p = sc_a.shape[1]

        def kernel(c_ref, s_ref, b_ref, a_ref, w_ref, ss_ref, bs_ref, o_ref):
            y = c_ref[...].astype(jnp.float32) * s_ref[...] + b_ref[...]
            sc = jnp.dot(a_ref[...], w_ref[...],
                         preferred_element_type=jnp.float32)     # 1x1 shortcut
            y = y + sc * ss_ref[...] + bs_ref[...]
            o_ref[...] = jnp.maximum(y, 0.0)

        args = (conv2, s2, b2, sc_a, sc_w, sc_s, sc_b)
        in_specs = [row_spec, vec_spec, vec_spec,
                    pl.BlockSpec((tile_m, cin_p), lambda i: (i, 0)),
                    pl.BlockSpec((cin_p, cp), lambda i: (0, 0)),
                    vec_spec, vec_spec]
        flops = 2 * m_pad * cin_p * cp
    else:
        def kernel(c_ref, s_ref, b_ref, r_ref, o_ref):
            y = c_ref[...].astype(jnp.float32) * s_ref[...] + b_ref[...]
            y = y + r_ref[...].astype(jnp.float32)
            o_ref[...] = jnp.maximum(y, 0.0)

        args = (conv2, s2, b2, residual)
        in_specs = [row_spec, vec_spec, vec_spec, row_spec]
        flops = 0

    in_bytes = sum(a.size * a.dtype.itemsize for a in args)
    cost = pl.CostEstimate(flops=flops, transcendentals=0,
                           bytes_accessed=int(in_bytes + m_pad * cp * 4))

    return pl.pallas_call(
        kernel,
        grid=(num_tiles,),
        in_specs=in_specs,
        out_specs=row_spec,
        out_shape=jax.ShapeDtypeStruct((m_pad, cp), jnp.float32),
        compiler_params=_COMPILER_PARAMS,
        cost_estimate=cost,
    )(*args)


# ----------------------------------------------------------------------------
# ResidualBlock forward (NCHW in, NCHW out, training-mode BN like the module)
# ----------------------------------------------------------------------------
def residual_block_forward(x_nchw, params, stride):
    x = jnp.transpose(x_nchw, (0, 2, 3, 1)).astype(jnp.float32)   # NHWC
    n, h, w, cin = x.shape
    cout = params["w1"].shape[0]
    cp = _round_up(cout, LANE)
    ho = (h + 2 - 3) // stride + 1
    wo = (w + 2 - 3) // stride + 1
    m = n * ho * wo
    tile_m = _pick_tile_m(m)
    m_pad = _round_up(m, tile_m)

    # ---- conv1: 3x3 / stride -> raw conv tiles (bf16) + BN statistics ------
    a1 = _im2col(x, 3, stride, 1)
    k1p = _round_up(a1.shape[1], LANE)
    a1p = _pad2d(a1, m_pad, k1p).astype(MXU_DTYPE)
    w1p = _pad2d(_weight_to_matrix(params["w1"]), k1p, cp).astype(MXU_DTYPE)
    conv1, sum1, sumsq1 = _matmul_stats_pallas(a1p, w1p, tile_m)
    s1, b1 = _bn_affine(sum1, sumsq1, m, params["g1"], params["b1"], cp)

    # ---- projection shortcut: stats-only pass (conv redone in final kernel)
    use_projection = (stride != 1) or (cin != cout)
    if use_projection:
        cinp = _round_up(cin, LANE)
        asp = _pad2d(_im2col(x, 1, stride, 0), m_pad, cinp).astype(MXU_DTYPE)
        wsp = _pad2d(_weight_to_matrix(params["ws"]), cinp, cp).astype(MXU_DTYPE)
        _, sums, sumsqs = _matmul_stats_pallas(asp, wsp, tile_m, emit_conv=False)
        ss, bs = _bn_affine(sums, sumsqs, m, params["gs"], params["bs"], cp)

    # ---- conv1 BN + ReLU folded (XLA-fused) into building conv2's A matrix -
    y1 = jnp.maximum(conv1[:m, :cout].astype(jnp.float32) * s1[:, :cout]
                     + b1[:, :cout], 0.0).reshape(n, ho, wo, cout)
    a2 = _im2col(y1, 3, 1, 1)
    k2p = _round_up(a2.shape[1], LANE)
    a2p = _pad2d(a2, m_pad, k2p).astype(MXU_DTYPE)
    w2p = _pad2d(_weight_to_matrix(params["w2"]), k2p, cp).astype(MXU_DTYPE)
    conv2, sum2, sumsq2 = _matmul_stats_pallas(a2p, w2p, tile_m)
    s2, b2 = _bn_affine(sum2, sumsq2, m, params["g2"], params["b2"], cp)

    # ---- final fused: BN(conv2) + shortcut + residual add + ReLU ------------
    if use_projection:
        out = _finalize_pallas(conv2, s2, b2, tile_m,
                               sc_a=asp, sc_w=wsp, sc_s=ss, sc_b=bs)
    else:
        res = _pad2d(x.reshape(n * h * w, cin), m_pad, cp).astype(MXU_DTYPE)
        out = _finalize_pallas(conv2, s2, b2, tile_m, residual=res)

    out = out[:m, :cout].reshape(n, ho, wo, cout)
    return jnp.transpose(out, (0, 3, 1, 2))                       # NCHW


# ----------------------------------------------------------------------------
# Pure-JAX f32 reference (correctness check only)
# ----------------------------------------------------------------------------
def _conv_ref(x_nhwc, w_oihw, stride, padding):
    return jax.lax.conv_general_dilated(
        x_nhwc, jnp.transpose(w_oihw, (2, 3, 1, 0)),
        window_strides=(stride, stride),
        padding=((padding, padding), (padding, padding)),
        dimension_numbers=("NHWC", "HWIO", "NHWC"))


def _bn_ref(y, g, b):
    mean = jnp.mean(y, axis=(0, 1, 2), keepdims=True)
    var = jnp.mean((y - mean) ** 2, axis=(0, 1, 2), keepdims=True)
    return (y - mean) * jax.lax.rsqrt(var + EPS) * g + b


def reference_forward(x_nchw, p, stride):
    x = jnp.transpose(x_nchw, (0, 2, 3, 1)).astype(jnp.float32)
    cin = x.shape[-1]
    cout = p["w1"].shape[0]
    y = jnp.maximum(_bn_ref(_conv_ref(x, p["w1"], stride, 1), p["g1"], p["b1"]), 0.0)
    y = _bn_ref(_conv_ref(y, p["w2"], 1, 1), p["g2"], p["b2"])
    if stride != 1 or cin != cout:
        s = _bn_ref(_conv_ref(x, p["ws"], stride, 0), p["gs"], p["bs"])
    else:
        s = x
    return jnp.transpose(jnp.maximum(y + s, 0.0), (0, 3, 1, 2))


# ----------------------------------------------------------------------------
if __name__ == "__main__":
    def make_params(key, cin, cout):
        ks = jax.random.split(key, 9)
        return {
            "w1": 0.1 * jax.random.normal(ks[0], (cout, cin, 3, 3), jnp.float32),
            "g1": 1.0 + 0.1 * jax.random.normal(ks[1], (cout,), jnp.float32),
            "b1": 0.1 * jax.random.normal(ks[2], (cout,), jnp.float32),
            "w2": 0.1 * jax.random.normal(ks[3], (cout, cout, 3, 3), jnp.float32),
            "g2": 1.0 + 0.1 * jax.random.normal(ks[4], (cout,), jnp.float32),
            "b2": 0.1 * jax.random.normal(ks[5], (cout,), jnp.float32),
            "ws": 0.1 * jax.random.normal(ks[6], (cout, cin, 1, 1), jnp.float32),
            "gs": 1.0 + 0.1 * jax.random.normal(ks[7], (cout,), jnp.float32),
            "bs": 0.1 * jax.random.normal(ks[8], (cout,), jnp.float32),
        }

    fwd = jax.jit(residual_block_forward, static_argnames=("stride",))

    key = jax.random.PRNGKey(0)
    k1, k2, k3, k4 = jax.random.split(key, 4)

    # bf16 MXU operands + bf16 HBM intermediates -> typical max deviation from
    # the f32 reference is ~2-4e-2; allow 1e-1 headroom.
    TOL = 1e-1

    # Case 1: downsampling block (stride=2, Cin != Cout) -> 1x1-conv shortcut.
    x1 = jax.random.normal(k1, (2, 4, 16, 16), jnp.float32)
    p1 = make_params(k2, 4, 8)
    out1 = jax.block_until_ready(fwd(x1, p1, stride=2))
    ref1 = jax.block_until_ready(reference_forward(x1, p1, 2))
    assert out1.shape == (2, 8, 8, 8), out1.shape
    err1 = float(jnp.max(jnp.abs(out1 - ref1)))
    assert err1 < TOL, err1

    # Case 2: identity shortcut (stride=1, Cin == Cout).
    x2 = jax.random.normal(k3, (2, 8, 16, 16), jnp.float32)
    p2 = make_params(k4, 8, 8)
    out2 = jax.block_until_ready(fwd(x2, p2, stride=1))
    ref2 = jax.block_until_ready(reference_forward(x2, p2, 1))
    assert out2.shape == (2, 8, 16, 16), out2.shape
    err2 = float(jnp.max(jnp.abs(out2 - ref2)))
    assert err2 < TOL, err2

    print("KERNEL_OK")
</pallas_src>

<mosaic_0001>
module attributes {stable_mosaic.version = 11 : i64} {
  func.func @kernel(%arg0: i32, %arg1: memref<64x128xbf16, #tpu.memory_space<vmem>>, %arg2: memref<128x128xbf16, #tpu.memory_space<vmem>>, %arg3: memref<64x128xbf16, #tpu.memory_space<vmem>>, %arg4: memref<8x128xf32, #tpu.memory_space<vmem>>, %arg5: memref<8x128xf32, #tpu.memory_space<vmem>>) attributes {dimension_semantics = [#tpu.dimension_semantics<parallel>], iteration_bounds = array<i64: 2>, scalar_prefetch = 0 : i64, scratch_operands = 0 : i64, tpu.core_type = #tpu.core_type<tc>, window_params = [{transform_indices = @transform_0, window_bounds = array<i64: 64, 128>}, {pipeline_mode = #tpu.pipeline_mode<synchronous>, transform_indices = @transform_1, window_bounds = array<i64: 128, 128>}, {transform_indices = @transform_2, window_bounds = array<i64: 64, 128>}, {transform_indices = @transform_3, window_bounds = array<i64: 8, 128>}, {transform_indices = @transform_4, window_bounds = array<i64: 8, 128>}]} {
    %c0 = arith.constant 0 : index
    %c0_0 = arith.constant 0 : index
    %0 = vector.load %arg1[%c0, %c0_0] : memref<64x128xbf16, #tpu.memory_space<vmem>>, vector<64x128xbf16>
    %c0_1 = arith.constant 0 : index
    %c0_2 = arith.constant 0 : index
    %1 = vector.load %arg2[%c0_1, %c0_2] : memref<128x128xbf16, #tpu.memory_space<vmem>>, vector<128x128xbf16>
    %cst = arith.constant dense<0.000000e+00> : vector<64x128xf32>
    %2 = tpu.matmul %0, %1, %cst {dimension_numbers = #tpu.dot_dimension_numbers<[1], [0], [0], [1], [0, 0, 1, 1], [], []>} : vector<64x128xbf16>, vector<128x128xbf16>, vector<64x128xf32> -> vector<64x128xf32>
    %3 = arith.truncf %2 : vector<64x128xf32> to vector<64x128xbf16>
    %c0_3 = arith.constant 0 : index
    %c0_4 = arith.constant 0 : index
    %4 = vector.load %arg3[%c0_3, %c0_4] : memref<64x128xbf16, #tpu.memory_space<vmem>>, vector<64x128xbf16>
    tpu.vector_store %arg3[%c0_3, %c0_4], %3 {strides = array<i32>} : memref<64x128xbf16, #tpu.memory_space<vmem>>, vector<64x128xbf16>,
    %5 = vector.shape_cast %2 : vector<64x128xf32> to vector<8x8x128xf32>
    %cst_5 = arith.constant dense<0.000000e+00> : vector<8x128xf32>
    %6 = vector.multi_reduction <add>, %5, %cst_5 [0] : vector<8x8x128xf32> to vector<8x128xf32>
    %c0_6 = arith.constant 0 : index
    %c0_7 = arith.constant 0 : index
    %7 = vector.load %arg4[%c0_6, %c0_7] : memref<8x128xf32, #tpu.memory_space<vmem>>, vector<8x128xf32>
    tpu.vector_store %arg4[%c0_6, %c0_7], %6 {strides = array<i32>} : memref<8x128xf32, #tpu.memory_space<vmem>>, vector<8x128xf32>,
    %8 = arith.mulf %5, %5 : vector<8x8x128xf32>
    %cst_8 = arith.constant dense<0.000000e+00> : vector<8x128xf32>
    %9 = vector.multi_reduction <add>, %8, %cst_8 [0] : vector<8x8x128xf32> to vector<8x128xf32>
    %c0_9 = arith.constant 0 : index
    %c0_10 = arith.constant 0 : index
    %10 = vector.load %arg5[%c0_9, %c0_10] : memref<8x128xf32, #tpu.memory_space<vmem>>, vector<8x128xf32>
    tpu.vector_store %arg5[%c0_9, %c0_10], %9 {strides = array<i32>} : memref<8x128xf32, #tpu.memory_space<vmem>>, vector<8x128xf32>,
    return
  }
  func.func @transform_0(%arg0: i32) -> (i32, i32) {
    %c0_i32 = arith.constant 0 : i32
    %c0_i32_0 = arith.constant 0 : i32
    return %arg0, %c0_i32 : i32, i32
  }
  func.func @transform_1(%arg0: i32) -> (i32, i32) {
    %c0_i32 = arith.constant 0 : i32
    %c0_i32_0 = arith.constant 0 : i32
    %c0_i32_1 = arith.constant 0 : i32
    return %c0_i32, %c0_i32_0 : i32, i32
  }
  func.func @transform_2(%arg0: i32) -> (i32, i32) {
    %c0_i32 = arith.constant 0 : i32
    %c0_i32_0 = arith.constant 0 : i32
    return %arg0, %c0_i32 : i32, i32
  }
  func.func @transform_3(%arg0: i32) -> (i32, i32) {
    %c0_i32 = arith.constant 0 : i32
    %c0_i32_0 = arith.constant 0 : i32
    return %arg0, %c0_i32 : i32, i32
  }
  func.func @transform_4(%arg0: i32) -> (i32, i32) {
    %c0_i32 = arith.constant 0 : i32
    %c0_i32_0 = arith.constant 0 : i32
    return %arg0, %c0_i32 : i32, i32
  }
}

module attributes {stable_mosaic.version = 11 : i64} {
  func.func @kernel(%arg0: i32, %arg1: memref<64x128xbf16, #tpu.memory_space<vmem>>, %arg2: memref<128x128xbf16, #tpu.memory_space<vmem>>, %arg3: memref<8x128xf32, #tpu.memory_space<vmem>>, %arg4: memref<8x128xf32, #tpu.memory_space<vmem>>) attributes {dimension_semantics = [#tpu.dimension_semantics<parallel>], iteration_bounds = array<i64: 2>, scalar_prefetch = 0 : i64, scratch_operands = 0 : i64, tpu.core_type = #tpu.core_type<tc>, window_params = [{transform_indices = @transform_0, window_bounds = array<i64: 64, 128>}, {pipeline_mode = #tpu.pipeline_mode<synchronous>, transform_indices = @transform_1, window_bounds = array<i64: 128, 128>}, {transform_indices = @transform_2, window_bounds = array<i64: 8, 128>}, {transform_indices = @transform_3, window_bounds = array<i64: 8, 128>}]} {
    %c0 = arith.constant 0 : index
    %c0_0 = arith.constant 0 : index
    %0 = vector.load %arg1[%c0, %c0_0] : memref<64x128xbf16, #tpu.memory_space<vmem>>, vector<64x128xbf16>
    %c0_1 = arith.constant 0 : index
    %c0_2 = arith.constant 0 : index
    %1 = vector.load %arg2[%c0_1, %c0_2] : memref<128x128xbf16, #tpu.memory_space<vmem>>, vector<128x128xbf16>
    %cst = arith.constant dense<0.000000e+00> : vector<64x128xf32>
    %2 = tpu.matmul %0, %1, %cst {dimension_numbers = #tpu.dot_dimension_numbers<[1], [0], [0], [1], [0, 0, 1, 1], [], []>} : vector<64x128xbf16>, vector<128x128xbf16>, vector<64x128xf32> -> vector<64x128xf32>
    %3 = vector.shape_cast %2 : vector<64x128xf32> to vector<8x8x128xf32>
    %cst_3 = arith.constant dense<0.000000e+00> : vector<8x128xf32>
    %4 = vector.multi_reduction <add>, %3, %cst_3 [0] : vector<8x8x128xf32> to vector<8x128xf32>
    %c0_4 = arith.constant 0 : index
    %c0_5 = arith.constant 0 : index
    %5 = vector.load %arg3[%c0_4, %c0_5] : memref<8x128xf32, #tpu.memory_space<vmem>>, vector<8x128xf32>
    tpu.vector_store %arg3[%c0_4, %c0_5], %4 {strides = array<i32>} : memref<8x128xf32, #tpu.memory_space<vmem>>, vector<8x128xf32>,
    %6 = arith.mulf %3, %3 : vector<8x8x128xf32>
    %cst_6 = arith.constant dense<0.000000e+00> : vector<8x128xf32>
    %7 = vector.multi_reduction <add>, %6, %cst_6 [0] : vector<8x8x128xf32> to vector<8x128xf32>
    %c0_7 = arith.constant 0 : index
    %c0_8 = arith.constant 0 : index
    %8 = vector.load %arg4[%c0_7, %c0_8] : memref<8x128xf32, #tpu.memory_space<vmem>>, vector<8x128xf32>
    tpu.vector_store %arg4[%c0_7, %c0_8], %7 {strides = array<i32>} : memref<8x128xf32, #tpu.memory_space<vmem>>, vector<8x128xf32>,
    return
  }
  func.func @transform_0(%arg0: i32) -> (i32, i32) {
    %c0_i32 = arith.constant 0 : i32
    %c0_i32_0 = arith.constant 0 : i32
    return %arg0, %c0_i32 : i32, i32
  }
  func.func @transform_1(%arg0: i32) -> (i32, i32) {
    %c0_i32 = arith.constant 0 : i32
    %c0_i32_0 = arith.constant 0 : i32
    %c0_i32_1 = arith.constant 0 : i32
    return %c0_i32, %c0_i32_0 : i32, i32
  }
  func.func @transform_2(%arg0: i32) -> (i32, i32) {
    %c0_i32 = arith.constant 0 : i32
    %c0_i32_0 = arith.constant 0 : i32
    return %arg0, %c0_i32 : i32, i32
  }
  func.func @transform_3(%arg0: i32) -> (i32, i32) {
    %c0_i32 = arith.constant 0 : i32
    %c0_i32_0 = arith.constant 0 : i32
    return %arg0, %c0_i32 : i32, i32
  }
}

module attributes {stable_mosaic.version = 11 : i64} {
  func.func @kernel(%arg0: i32, %arg1: memref<64x128xbf16, #tpu.memory_space<vmem>>, %arg2: memref<1x128xf32, #tpu.memory_space<vmem>>, %arg3: memref<1x128xf32, #tpu.memory_space<vmem>>, %arg4: memref<64x128xbf16, #tpu.memory_space<vmem>>, %arg5: memref<128x128xbf16, #tpu.memory_space<vmem>>, %arg6: memref<1x128xf32, #tpu.memory_space<vmem>>, %arg7: memref<1x128xf32, #tpu.memory_space<vmem>>, %arg8: memref<64x128xf32, #tpu.memory_space<vmem>>) attributes {dimension_semantics = [#tpu.dimension_semantics<parallel>], iteration_bounds = array<i64: 2>, scalar_prefetch = 0 : i64, scratch_operands = 0 : i64, tpu.core_type = #tpu.core_type<tc>, window_params = [{transform_indices = @transform_0, window_bounds = array<i64: 64, 128>}, {pipeline_mode = #tpu.pipeline_mode<synchronous>, transform_indices = @transform_1, window_bounds = array<i64: 1, 128>}, {pipeline_mode = #tpu.pipeline_mode<synchronous>, transform_indices = @transform_2, window_bounds = array<i64: 1, 128>}, {transform_indices = @transform_3, window_bounds = array<i64: 64, 128>}, {pipeline_mode = #tpu.pipeline_mode<synchronous>, transform_indices = @transform_4, window_bounds = array<i64: 128, 128>}, {pipeline_mode = #tpu.pipeline_mode<synchronous>, transform_indices = @transform_5, window_bounds = array<i64: 1, 128>}, {pipeline_mode = #tpu.pipeline_mode<synchronous>, transform_indices = @transform_6, window_bounds = array<i64: 1, 128>}, {transform_indices = @transform_7, window_bounds = array<i64: 64, 128>}]} {
    %c0 = arith.constant 0 : index
    %c0_0 = arith.constant 0 : index
    %0 = vector.load %arg1[%c0, %c0_0] : memref<64x128xbf16, #tpu.memory_space<vmem>>, vector<64x128xbf16>
    %1 = arith.extf %0 : vector<64x128xbf16> to vector<64x128xf32>
    %c0_1 = arith.constant 0 : index
    %c0_2 = arith.constant 0 : index
    %2 = vector.load %arg2[%c0_1, %c0_2] : memref<1x128xf32, #tpu.memory_space<vmem>>, vector<1x128xf32>
    %3 = vector.broadcast %2 : vector<1x128xf32> to vector<64x128xf32>
    %4 = arith.mulf %1, %3 : vector<64x128xf32>
    %c0_3 = arith.constant 0 : index
    %c0_4 = arith.constant 0 : index
    %5 = vector.load %arg3[%c0_3, %c0_4] : memref<1x128xf32, #tpu.memory_space<vmem>>, vector<1x128xf32>
    %6 = vector.broadcast %5 : vector<1x128xf32> to vector<64x128xf32>
    %7 = arith.addf %4, %6 : vector<64x128xf32>
    %c0_5 = arith.constant 0 : index
    %c0_6 = arith.constant 0 : index
    %8 = vector.load %arg4[%c0_5, %c0_6] : memref<64x128xbf16, #tpu.memory_space<vmem>>, vector<64x128xbf16>
    %c0_7 = arith.constant 0 : index
    %c0_8 = arith.constant 0 : index
    %9 = vector.load %arg5[%c0_7, %c0_8] : memref<128x128xbf16, #tpu.memory_space<vmem>>, vector<128x128xbf16>
    %cst = arith.constant dense<0.000000e+00> : vector<64x128xf32>
    %10 = tpu.matmul %8, %9, %cst {dimension_numbers = #tpu.dot_dimension_numbers<[1], [0], [0], [1], [0, 0, 1, 1], [], []>} : vector<64x128xbf16>, vector<128x128xbf16>, vector<64x128xf32> -> vector<64x128xf32>
    %c0_9 = arith.constant 0 : index
    %c0_10 = arith.constant 0 : index
    %11 = vector.load %arg6[%c0_9, %c0_10] : memref<1x128xf32, #tpu.memory_space<vmem>>, vector<1x128xf32>
    %12 = vector.broadcast %11 : vector<1x128xf32> to vector<64x128xf32>
    %13 = arith.mulf %10, %12 : vector<64x128xf32>
    %14 = arith.addf %7, %13 : vector<64x128xf32>
    %c0_11 = arith.constant 0 : index
    %c0_12 = arith.constant 0 : index
    %15 = vector.load %arg7[%c0_11, %c0_12] : memref<1x128xf32, #tpu.memory_space<vmem>>, vector<1x128xf32>
    %16 = vector.broadcast %15 : vector<1x128xf32> to vector<64x128xf32>
    %17 = arith.addf %14, %16 : vector<64x128xf32>
    %cst_13 = arith.constant 0.000000e+00 : f32
    %18 = vector.broadcast %cst_13 : f32 to vector<64x128xf32>
    %19 = arith.maximumf %17, %18 : vector<64x128xf32>
    %c0_14 = arith.constant 0 : index
    %c0_15 = arith.constant 0 : index
    %20 = vector.load %arg8[%c0_14, %c0_15] : memref<64x128xf32, #tpu.memory_space<vmem>>, vector<64x128xf32>
    tpu.vector_store %arg8[%c0_14, %c0_15], %19 {strides = array<i32>} : memref<64x128xf32, #tpu.memory_space<vmem>>, vector<64x128xf32>,
    return
  }
  func.func @transform_0(%arg0: i32) -> (i32, i32) {
    %c0_i32 = arith.constant 0 : i32
    %c0_i32_0 = arith.constant 0 : i32
    return %arg0, %c0_i32 : i32, i32
  }
  func.func @transform_1(%arg0: i32) -> (i32, i32) {
    %c0_i32 = arith.constant 0 : i32
    %c0_i32_0 = arith.constant 0 : i32
    %c0_i32_1 = arith.constant 0 : i32
    return %c0_i32, %c0_i32_0 : i32, i32
  }
  func.func @transform_2(%arg0: i32) -> (i32, i32) {
    %c0_i32 = arith.constant 0 : i32
    %c0_i32_0 = arith.constant 0 : i32
    %c0_i32_1 = arith.constant 0 : i32
    return %c0_i32, %c0_i32_0 : i32, i32
  }
  func.func @transform_3(%arg0: i32) -> (i32, i32) {
    %c0_i32 = arith.constant 0 : i32
    %c0_i32_0 = arith.constant 0 : i32
    return %arg0, %c0_i32 : i32, i32
  }
  func.func @transform_4(%arg0: i32) -> (i32, i32) {
    %c0_i32 = arith.constant 0 : i32
    %c0_i32_0 = arith.constant 0 : i32
    %c0_i32_1 = arith.constant 0 : i32
    return %c0_i32, %c0_i32_0 : i32, i32
  }
  func.func @transform_5(%arg0: i32) -> (i32, i32) {
    %c0_i32 = arith.constant 0 : i32
    %c0_i32_0 = arith.constant 0 : i32
    %c0_i32_1 = arith.constant 0 : i32
    return %c0_i32, %c0_i32_0 : i32, i32
  }
  func.func @transform_6(%arg0: i32) -> (i32, i32) {
    %c0_i32 = arith.constant 0 : i32
    %c0_i32_0 = arith.constant 0 : i32
    %c0_i32_1 = arith.constant 0 : i32
    return %c0_i32, %c0_i32_0 : i32, i32
  }
  func.func @transform_7(%arg0: i32) -> (i32, i32) {
    %c0_i32 = arith.constant 0 : i32
    %c0_i32_0 = arith.constant 0 : i32
    return %arg0, %c0_i32 : i32, i32
  }
}

</mosaic_0001>

<llo_original>
// kernel: residual_block_forward.5
$region0: #{residual_block_forward.5}
  #allocation0 [shape = 'u32[]', space=smem, size = 0x4, offset = 0x4, fixed_abs, tag = 'smem constant byte address 0x4 - core index']
  #allocation1 [shape = 'u32[144,128]{1,0:T(1,128)}', space=vmem, size = 0x12000, scoped, tag = 'internal scratch']
  %s0 = inlined_call_operand.vmem [shape: bf16[128,128], index: 0, kind: input, shape index: {}]
  %s1 = inlined_call_operand.vmem [shape: bf16[128,128], index: 1, kind: input, shape index: {}]
  %s2 = inlined_call_operand.vmem [shape: f32[16,128], index: 2, kind: output, shape index: {0}]
  %s3 = inlined_call_operand.vmem [shape: f32[16,128], index: 3, kind: output, shape index: {1}]
  %4 = xla_tuple %s2, %s3
  %s5 = sld [smem:[#allocation0]]
  $region49: #{residual_block_forward.5} parent=0
    _
  %s7 = ssub.s32 1, %s5
  %s8 = scalar_select 0, %s7, %s5
  loop: start=0, step=1, limit=4
  $region2: #{residual_block_forward.5} parent=0 // loop_pre_header
    _
  $region3: #{residual_block_forward.5} parent=0 // loop_header
    %s10 = sphi 0, %s14
    %p11 = scmp.ge.s32.totalorder %s10, 4
    %s20 = sphi 0, %s22
    %s23 = sphi 0, %s20
    %s24 = sphi 0, %s23
    %s40 = sphi 0, %s24
    %s44 = sphi 0, %s44
    %s46 = sphi 0, %s44
    %s47 = sphi 0, %s46
    %s61 = sphi 0, %s47
    %s67 = sphi 0, %s69
    %s70 = sphi 0, %s67
    %s71 = sphi 0, %s70
    %s87 = sphi 0, %s71
    %s93 = sphi 0, %s95
    %s96 = sphi 0, %s93
    %s97 = sphi 0, %s96
    %s113 = sphi 0, %s97
  $region4: #{residual_block_forward.5} parent=0 // loop_header_branch
    %13 = sbr.rel (%p11) target = $region8
  $region5: #{residual_block_forward.5} parent=0 // loop_body
    %s15 = ssub.s32 %s10, 1
    %s16 = ssub.s32 %s10, 2
    %s17 = sadd.s32 %s10, 1
    %s18 = ssub.s32 %s10, %s17
    %p19 = scmp.eq.s32.totalorder %s18, 0
    %s21 = sadd.s32 %s20, 1
    %s22 = scalar_select %p19, %s20, %s21
    %p25 = pneg %p19
    %p26 = scmp.eq.s32.totalorder %s10, 1
    %p27 = por %p25, %p26
    %p28 = scmp.ne.s32.totalorder %s20, %s23
    %p29 = scmp.eq.s32.totalorder %s10, 0
    %p30 = por %p28, %p29
    %p31 = scmp.ne.s32.totalorder %s20, %s23
    %p32 = scmp.eq.s32.totalorder %s15, 1
    %p33 = por %p31, %p32
    %p34 = scmp.ne.s32.totalorder %s23, %s24
    %p35 = scmp.eq.s32.totalorder %s15, 0
    %p36 = por %p34, %p35
    %p37 = scmp.ne.s32.totalorder %s23, %s24
    %p38 = scmp.eq.s32.totalorder %s16, 1
    %p39 = por %p37, %p38
    %p41 = scmp.ne.s32.totalorder %s24, %s40
    %p42 = scmp.eq.s32.totalorder %s16, 0
    %p43 = por %p41, %p42
    %s45 = sadd.s32 %s44, 1
    %p48 = scmp.eq.s32.totalorder %s10, 1
    %p49 = scmp.ne.s32.totalorder %s44, %s46
    %p50 = scmp.eq.s32.totalorder %s10, 0
    %p51 = por %p49, %p50
    %p52 = scmp.ne.s32.totalorder %s44, %s46
    %p53 = scmp.eq.s32.totalorder %s15, 1
    %p54 = por %p52, %p53
    %p55 = scmp.ne.s32.totalorder %s46, %s47
    %p56 = scmp.eq.s32.totalorder %s15, 0
    %p57 = por %p55, %p56
    %p58 = scmp.ne.s32.totalorder %s46, %s47
    %p59 = scmp.eq.s32.totalorder %s16, 1
    %p60 = por %p58, %p59
    %p62 = scmp.ne.s32.totalorder %s47, %s61
    %p63 = scmp.eq.s32.totalorder %s16, 0
    %p64 = por %p62, %p63
    %s65 = ssub.s32 %s10, %s17
    %p66 = scmp.eq.s32.totalorder %s65, 0
    %s68 = sadd.s32 %s67, 1
    %s69 = scalar_select %p66, %s67, %s68
    %p72 = pneg %p66
    %p73 = scmp.eq.s32.totalorder %s10, 1
    %p74 = por %p72, %p73
    %p75 = scmp.ne.s32.totalorder %s67, %s70
    %p76 = scmp.eq.s32.totalorder %s10, 0
    %p77 = por %p75, %p76
    %p78 = scmp.ne.s32.totalorder %s67, %s70
    %p79 = scmp.eq.s32.totalorder %s15, 1
    %p80 = por %p78, %p79
    %p81 = scmp.ne.s32.totalorder %s70, %s71
    %p82 = scmp.eq.s32.totalorder %s15, 0
    %p83 = por %p81, %p82
    %p84 = scmp.ne.s32.totalorder %s70, %s71
    %p85 = scmp.eq.s32.totalorder %s16, 1
    %p86 = por %p84, %p85
    %p88 = scmp.ne.s32.totalorder %s71, %s87
    %p89 = scmp.eq.s32.totalorder %s16, 0
    %p90 = por %p88, %p89
    %s91 = ssub.s32 %s10, %s17
    %p92 = scmp.eq.s32.totalorder %s91, 0
    %s94 = sadd.s32 %s93, 1
    %s95 = scalar_select %p92, %s93, %s94
    %p98 = pneg %p92
    %p99 = scmp.eq.s32.totalorder %s10, 1
    %p100 = por %p98, %p99
    %p101 = scmp.ne.s32.totalorder %s93, %s96
    %p102 = scmp.eq.s32.totalorder %s10, 0
    %p103 = por %p101, %p102
    %p104 = scmp.ne.s32.totalorder %s93, %s96
    %p105 = scmp.eq.s32.totalorder %s15, 1
    %p106 = por %p104, %p105
    %p107 = scmp.ne.s32.totalorder %s96, %s97
    %p108 = scmp.eq.s32.totalorder %s15, 0
    %p109 = por %p107, %p108
    %p110 = scmp.ne.s32.totalorder %s96, %s97
    %p111 = scmp.eq.s32.totalorder %s16, 1
    %p112 = por %p110, %p111
    %p114 = scmp.ne.s32.totalorder %s97, %s113
    %p115 = scmp.eq.s32.totalorder %s16, 0
    %p116 = por %p114, %p115
    %p117 = scmp.le.s32.totalorder 1, %s10
    %p118 = scmp.lt.s32.totalorder %s10, 3
    %p119 = pnand %p117, %p118
    %p120 = pneg %p119
    // Predicated region
    $region9: #{residual_block_forward.5} parent=5 // pred_check
      _
    $region10: #{residual_block_forward.5} parent=5 // pred_check_branch
      %122 = sbr.rel (%p119) target = $region12
    $region11: #{residual_block_forward.5} parent=5 // pred_region
      %s123 = ssub.s32 %s10, 1
      // Predicated region
      $region13: #{residual_block_forward.5} parent=11 // pred_check
        %p124 = pneg %p57
      $region14: #{residual_block_forward.5} parent=11 // pred_check_branch
        %126 = sbr.rel (%p124) target = $region16
      $region15: #{residual_block_forward.5} parent=11 // pred_region
        _
      $region16: #{residual_block_forward.5} parent=11 // pred_fallthru
        _
    $region12: #{residual_block_forward.5} parent=5 // pred_fallthru
      _
    %p127 = scmp.lt.s32.totalorder %s10, 2
    // Predicated region
    $region17: #{residual_block_forward.5} parent=5 // pred_check
      %p128 = pneg %p127
    $region18: #{residual_block_forward.5} parent=5 // pred_check_branch
      %130 = sbr.rel (%p128) target = $region20
    $region19: #{residual_block_forward.5} parent=5 // pred_region
      // Predicated region
      $region21: #{residual_block_forward.5} parent=19 // pred_check
        %p131 = pneg %p30
      $region22: #{residual_block_forward.5} parent=19 // pred_check_branch
        %133 = sbr.rel (%p131) target = $region24
      $region23: #{residual_block_forward.5} parent=19 // pred_region
        %s134 = smul.u32 8, %s10
        %p135 = scmp.lt.s32.totalorder %s134, 15
        %s136 = scalar_select %p135, %s134, 15
        %s137 = smul.addr %s136, 4
        %s138 = scalar_lea.vmem %s0, %s137
        %s139 = smul.u32 8, %s10
      $region24: #{residual_block_forward.5} parent=19 // pred_fallthru
        _
    $region20: #{residual_block_forward.5} parent=5 // pred_fallthru
      _
    %p140 = scmp.le.s32.totalorder 1, %s10
    %p141 = scmp.lt.s32.totalorder %s10, 3
    %p142 = pnand %p140, %p141
    %p143 = pneg %p142
    // Predicated region
    $region25: #{residual_block_forward.5} parent=5 // pred_check
      _
    $region26: #{residual_block_forward.5} parent=5 // pred_check_branch
      %145 = sbr.rel (%p142) target = $region28
    $region27: #{residual_block_forward.5} parent=5 // pred_region
      %s146 = ssub.s32 %s10, 1
      %s147 = smul.u32 8, %s15
      %p148 = scmp.lt.s32.totalorder %s147, 15
      %s149 = scalar_select %p148, %s147, 15
      %s150 = smul.addr %s149, 4
      %s151 = scalar_lea.vmem %s0, %s150
      %p152 = pneg %p36
      %p153 = pneg %p33
      %p154 = pneg %p57
      %p155 = pneg %p54
      %p156 = pneg %p83
      %p157 = pneg %p80
      %p158 = scmp.lt.s32.totalorder %s15, 1
      %s159 = scalar_select %p158, %s15, 1
      %s160 = smul.addr %s159, 8
      %s161 = scalar_lea.vmem %s2, %s160
      %p162 = pneg %p109
      %p163 = pneg %p106
      %p164 = scmp.lt.s32.totalorder %s15, 1
      %s165 = scalar_select %p164, %s15, 1
      %s166 = smul.addr %s165, 8
      %s167 = scalar_lea.vmem %s3, %s166
      %s168 = smul.u32 8, %s15
      %p169 = scmp.lt.s32.totalorder %s168, 15
      %s170 = scalar_select %p169, %s168, 15
      %s171 = smul.addr %s170, 4
      %s172 = scalar_lea.vmem %s0, %s171
      %s173 = smul.u32 8, %s15
      %p174 = scmp.lt.s32.totalorder %s15, 1
      %s175 = scalar_select %p174, %s15, 1
      %s176 = smul.addr %s175, 8
      %s177 = scalar_lea.vmem %s2, %s176
      %p178 = scmp.lt.s32.totalorder %s15, 1
      %s179 = scalar_select %p178, %s15, 1
      %s180 = smul.addr %s179, 8
      %s181 = scalar_lea.vmem %s3, %s180
      %v183 = vld [vmem:[%s172] sm:$0xf]
      %v184 = vld [vmem:[%s172 + $0x4] sm:$0xf]
      %v185 = vld [vmem:[%s172 + $0x8] sm:$0xf]
      %v186 = vld [vmem:[%s172 + $0xc] sm:$0xf]
      %v187 = vld [vmem:[%s172 + $0x10] sm:$0xf]
      %v188 = vld [vmem:[%s172 + $0x14] sm:$0xf]
      %v189 = vld [vmem:[%s172 + $0x18] sm:$0xf]
      %v190 = vld [vmem:[%s172 + $0x1c] sm:$0xf]
      %v191 = vld [vmem:[%s1] sm:$0xf]
      %v192 = vld [vmem:[%s1 + $0x4] sm:$0xf]
      %v193 = vld [vmem:[%s1 + $0x8] sm:$0xf]
      %v194 = vld [vmem:[%s1 + $0xc] sm:$0xf]
      %v195 = vld [vmem:[%s1 + $0x10] sm:$0xf]
      %v196 = vld [vmem:[%s1 + $0x14] sm:$0xf]
      %v197 = vld [vmem:[%s1 + $0x18] sm:$0xf]
      %v198 = vld [vmem:[%s1 + $0x1c] sm:$0xf]
      %v199 = vld [vmem:[%s1 + $0x20] sm:$0xf]
      %v200 = vld [vmem:[%s1 + $0x24] sm:$0xf]
      %v201 = vld [vmem:[%s1 + $0x28] sm:$0xf]
      %v202 = vld [vmem:[%s1 + $0x2c] sm:$0xf]
      %v203 = vld [vmem:[%s1 + $0x30] sm:$0xf]
      %v204 = vld [vmem:[%s1 + $0x34] sm:$0xf]
      %v205 = vld [vmem:[%s1 + $0x38] sm:$0xf]
      %v206 = vld [vmem:[%s1 + $0x3c] sm:$0xf]
      %v215 = vunpack.c.l.b16 %v183
      %v216 = vunpack.c.l.b16 %v184
      %v217 = vunpack.c.l.b16 %v185
      %v218 = vunpack.c.l.b16 %v186
      %v219 = vunpack.c.l.b16 %v187
      %v220 = vunpack.c.l.b16 %v188
      %v221 = vunpack.c.l.b16 %v189
      %v222 = vunpack.c.l.b16 %v190
      %v223 = vpack.c.b16 %v216, %v215
      %v224 = vpack.c.b16 %v218, %v217
      %v225 = vpack.c.b16 %v220, %v219
      %v226 = vpack.c.b16 %v222, %v221
      %v247 = vunpack.c.l.b16 %v191
      %v248 = vunpack.c.l.b16 %v192
      %v249 = vunpack.c.l.b16 %v193
      %v250 = vunpack.c.l.b16 %v194
      %v251 = vunpack.c.l.b16 %v195
      %v252 = vunpack.c.l.b16 %v196
      %v253 = vunpack.c.l.b16 %v197
      %v254 = vunpack.c.l.b16 %v198
      %v255 = vunpack.c.l.b16 %v199
      %v256 = vunpack.c.l.b16 %v200
      %v257 = vunpack.c.l.b16 %v201
      %v258 = vunpack.c.l.b16 %v202
      %v259 = vunpack.c.l.b16 %v203
      %v260 = vunpack.c.l.b16 %v204
      %v261 = vunpack.c.l.b16 %v205
      %v262 = vunpack.c.l.b16 %v206
      %v263 = vpack.c.b16 %v248, %v247
      %v264 = vpack.c.b16 %v250, %v249
      %v265 = vpack.c.b16 %v252, %v251
      %v266 = vpack.c.b16 %v254, %v253
      %v267 = vpack.c.b16 %v256, %v255
      %v268 = vpack.c.b16 %v258, %v257
      %v269 = vpack.c.b16 %v260, %v259
      %v270 = vpack.c.b16 %v262, %v261
      %279 = vmatprep.subr.bf16.mxu0 0
      %280 = vmatpush1.bf16.msra.mxu0 %v263
      %281 = vmatprep.subr.bf16.mxu0 0
      %282 = vmatpush1.bf16.msra.mxu0 %v264
      %283 = vmatprep.subr.bf16.mxu0 0
      %284 = vmatpush1.bf16.msra.mxu0 %v265
      %285 = vmatprep.subr.bf16.mxu0 0
      %286 = vmatpush1.bf16.msra.mxu0 %v266
      %287 = vmatprep.subr.bf16.mxu0 0
      %288 = vmatpush1.bf16.msra.mxu0 %v267
      %289 = vmatprep.subr.bf16.mxu0 0
      %290 = vmatpush1.bf16.msra.mxu0 %v268
      %291 = vmatprep.subr.bf16.mxu0 0
      %292 = vmatpush1.bf16.msra.mxu0 %v269
      %293 = vmatprep.subr.bf16.mxu0 0
      %294 = vmatpush1.bf16.msra.mxu0 %v270
      %295 = vmatprep.subr.bf16.mxu0 0
      %296 = vmatpush1.bf16.msra.mxu0 0
      %297 = vmatprep.subr.bf16.mxu0 0
      %298 = vmatpush1.bf16.msra.mxu0 0
      %299 = vmatprep.subr.bf16.mxu0 0
      %300 = vmatpush1.bf16.msra.mxu0 0
      %301 = vmatprep.subr.bf16.mxu0 0
      %302 = vmatpush1.bf16.msra.mxu0 0
      %303 = vmatprep.subr.bf16.mxu0 0
      %304 = vmatpush1.bf16.msra.mxu0 0
      %305 = vmatprep.subr.bf16.mxu0 0
      %306 = vmatpush1.bf16.msra.mxu0 0
      %307 = vmatprep.subr.bf16.mxu0 0
      %308 = vmatpush1.bf16.msra.mxu0 0
      %309 = vmatprep.subr.bf16.mxu0 0
      %310 = vmatpush1.bf16.msra.mxu0 0
      %311 = vmatprep.mubr.bf16.mxu0 0
      %312 = vmatmul.mubr.bf16.gmra.mrb[0].mxu0 %v223
      %v313 = vpop.f32.mrb[0].mxu0
      %v314 = vadd.f32 0.0, %v313
      %v315 = vpop.f32.mrb[0].mxu0
      %v316 = vpop.f32.mrb[0].mxu0
      %v317 = vadd.f32 0.0, %v316
      %v318 = vpop.f32.mrb[0].mxu0
      %319 = vmatprep.mubr.bf16.mxu0 0
      %320 = vmatmul.mubr.bf16.gmra.mrb[0].mxu0 %v224
      %v321 = vpop.f32.mrb[0].mxu0
      %v322 = vadd.f32 0.0, %v321
      %v323 = vpop.f32.mrb[0].mxu0
      %v324 = vpop.f32.mrb[0].mxu0
      %v325 = vadd.f32 0.0, %v324
      %v326 = vpop.f32.mrb[0].mxu0
      %327 = vmatprep.mubr.bf16.mxu0 0
      %328 = vmatmul.mubr.bf16.gmra.mrb[0].mxu0 %v225
      %v329 = vpop.f32.mrb[0].mxu0
      %v330 = vadd.f32 0.0, %v329
      %v331 = vpop.f32.mrb[0].mxu0
      %v332 = vpop.f32.mrb[0].mxu0
      %v333 = vadd.f32 0.0, %v332
      %v334 = vpop.f32.mrb[0].mxu0
      %335 = vmatprep.mubr.bf16.mxu0 0
      %336 = vmatmul.mubr.bf16.gmra.mrb[0].mxu0 %v226
      %v337 = vpop.f32.mrb[0].mxu0
      %v338 = vadd.f32 0.0, %v337
      %v339 = vpop.f32.mrb[0].mxu0
      %v340 = vpop.f32.mrb[0].mxu0
      %v341 = vadd.f32 0.0, %v340
      %v342 = vpop.f32.mrb[0].mxu0
      %343 = vdwg.mxu0
      %v344 = vadd.f32 %v314, %v317
      %v345 = vadd.f32 %v344, %v322
      %v346 = vadd.f32 %v345, %v325
      %v347 = vadd.f32 %v346, %v330
      %v348 = vadd.f32 %v347, %v333
      %v349 = vadd.f32 %v348, %v338
      %v350 = vadd.f32 %v349, %v341
      %351 = vst [vmem:[%s177] sm:$0xff] %v350
      %v352 = vmul.f32 %v314, %v314
      %v353 = vmul.f32 %v317, %v317
      %v354 = vmul.f32 %v322, %v322
      %v355 = vmul.f32 %v325, %v325
      %v356 = vmul.f32 %v330, %v330
      %v357 = vmul.f32 %v333, %v333
      %v358 = vmul.f32 %v338, %v338
      %v359 = vmul.f32 %v341, %v341
      %v360 = vadd.f32 %v352, %v353
      %v361 = vadd.f32 %v360, %v354
      %v362 = vadd.f32 %v361, %v355
      %v363 = vadd.f32 %v362, %v356
      %v364 = vadd.f32 %v363, %v357
      %v365 = vadd.f32 %v364, %v358
      %v366 = vadd.f32 %v365, %v359
      %367 = vst [vmem:[%s181] sm:$0xff] %v366
      %p368 = scmp.lt.s32.totalorder %s15, 1
      %s369 = scalar_select %p368, %s15, 1
      %s370 = smul.addr %s369, 8
      %s371 = scalar_lea.vmem %s2, %s370
      %p372 = scmp.lt.s32.totalorder %s15, 1
      %s373 = scalar_select %p372, %s15, 1
      %s374 = smul.addr %s373, 8
      %s375 = scalar_lea.vmem %s3, %s374
      // Predicated region
      $region29: #{residual_block_forward.5} parent=27 // pred_check
        %p376 = pneg %p80
      $region30: #{residual_block_forward.5} parent=27 // pred_check_branch
        %378 = sbr.rel (%p376) target = $region32
      $region31: #{residual_block_forward.5} parent=27 // pred_region
        _
      $region32: #{residual_block_forward.5} parent=27 // pred_fallthru
        _
      // Predicated region
      $region33: #{residual_block_forward.5} parent=27 // pred_check
        %p379 = pneg %p106
      $region34: #{residual_block_forward.5} parent=27 // pred_check_branch
        %381 = sbr.rel (%p379) target = $region36
      $region35: #{residual_block_forward.5} parent=27 // pred_region
        _
      $region36: #{residual_block_forward.5} parent=27 // pred_fallthru
        _
    $region28: #{residual_block_forward.5} parent=5 // pred_fallthru
      _
    %p382 = scmp.le.s32.totalorder 2, %s10
    // Predicated region
    $region37: #{residual_block_forward.5} parent=5 // pred_check
      %p383 = pneg %p382
    $region38: #{residual_block_forward.5} parent=5 // pred_check_branch
      %385 = sbr.rel (%p383) target = $region40
    $region39: #{residual_block_forward.5} parent=5 // pred_region
      %s386 = ssub.s32 %s10, 2
      // Predicated region
      $region41: #{residual_block_forward.5} parent=39 // pred_check
        %p387 = pneg %p86
      $region42: #{residual_block_forward.5} parent=39 // pred_check_branch
        %389 = sbr.rel (%p387) target = $region44
      $region43: #{residual_block_forward.5} parent=39 // pred_region
        %p390 = scmp.lt.s32.totalorder %s16, 1
        %s391 = scalar_select %p390, %s16, 1
        %s392 = smul.addr %s391, 8
        %s393 = scalar_lea.vmem %s2, %s392
      $region44: #{residual_block_forward.5} parent=39 // pred_fallthru
        _
      // Predicated region
      $region45: #{residual_block_forward.5} parent=39 // pred_check
        %p394 = pneg %p112
      $region46: #{residual_block_forward.5} parent=39 // pred_check_branch
        %396 = sbr.rel (%p394) target = $region48
      $region47: #{residual_block_forward.5} parent=39 // pred_region
        %p397 = scmp.lt.s32.totalorder %s16, 1
        %s398 = scalar_select %p397, %s16, 1
        %s399 = smul.addr %s398, 8
        %s400 = scalar_lea.vmem %s3, %s399
      $region48: #{residual_block_forward.5} parent=39 // pred_fallthru
        _
    $region40: #{residual_block_forward.5} parent=5 // pred_fallthru
      _
  $region6: #{residual_block_forward.5} parent=0 // loop_footer
    %s14 = sadd.s32 1, %s10
  $region7: #{residual_block_forward.5} parent=0 // loop_footer_branch
    %9 = sbr.rel target = $region3
  $region8: #{residual_block_forward.5} parent=0 // loop_exit
    _

// kernel: residual_block_forward.4
$region0: #{residual_block_forward.4}
  #allocation0 [shape = 'u32[]', space=smem, size = 0x4, offset = 0x4, fixed_abs, tag = 'smem constant byte address 0x4 - core index']
  #allocation1 [shape = 'u32[144,128]{1,0:T(1,128)}', space=vmem, size = 0x12000, scoped, tag = 'internal scratch']
  %s0 = inlined_call_operand.vmem [shape: bf16[128,128], index: 0, kind: input, shape index: {}]
  %s1 = inlined_call_operand.vmem [shape: bf16[128,128], index: 1, kind: input, shape index: {}]
  %s2 = inlined_call_operand.vmem [shape: bf16[128,128], index: 2, kind: output, shape index: {0}]
  %s3 = inlined_call_operand.vmem [shape: f32[16,128], index: 3, kind: output, shape index: {1}]
  %s4 = inlined_call_operand.vmem [shape: f32[16,128], index: 4, kind: output, shape index: {2}]
  %5 = xla_tuple %s2, %s3, %s4
  %s6 = sld [smem:[#allocation0]]
  $region57: #{residual_block_forward.4} parent=0
    _
  %s8 = ssub.s32 1, %s6
  %s9 = scalar_select 0, %s8, %s6
  loop: start=0, step=1, limit=4
  $region2: #{residual_block_forward.4} parent=0 // loop_pre_header
    _
  $region3: #{residual_block_forward.4} parent=0 // loop_header
    %s11 = sphi 0, %s15
    %p12 = scmp.ge.s32.totalorder %s11, 4
    %s21 = sphi 0, %s23
    %s24 = sphi 0, %s21
    %s25 = sphi 0, %s24
    %s41 = sphi 0, %s25
    %s45 = sphi 0, %s45
    %s47 = sphi 0, %s45
    %s48 = sphi 0, %s47
    %s62 = sphi 0, %s48
    %s68 = sphi 0, %s70
    %s71 = sphi 0, %s68
    %s72 = sphi 0, %s71
    %s88 = sphi 0, %s72
    %s94 = sphi 0, %s96
    %s97 = sphi 0, %s94
    %s98 = sphi 0, %s97
    %s114 = sphi 0, %s98
    %s120 = sphi 0, %s122
    %s123 = sphi 0, %s120
    %s124 = sphi 0, %s123
    %s140 = sphi 0, %s124
  $region4: #{residual_block_forward.4} parent=0 // loop_header_branch
    %14 = sbr.rel (%p12) target = $region8
  $region5: #{residual_block_forward.4} parent=0 // loop_body
    %s16 = ssub.s32 %s11, 1
    %s17 = ssub.s32 %s11, 2
    %s18 = sadd.s32 %s11, 1
    %s19 = ssub.s32 %s11, %s18
    %p20 = scmp.eq.s32.totalorder %s19, 0
    %s22 = sadd.s32 %s21, 1
    %s23 = scalar_select %p20, %s21, %s22
    %p26 = pneg %p20
    %p27 = scmp.eq.s32.totalorder %s11, 1
    %p28 = por %p26, %p27
    %p29 = scmp.ne.s32.totalorder %s21, %s24
    %p30 = scmp.eq.s32.totalorder %s11, 0
    %p31 = por %p29, %p30
    %p32 = scmp.ne.s32.totalorder %s21, %s24
    %p33 = scmp.eq.s32.totalorder %s16, 1
    %p34 = por %p32, %p33
    %p35 = scmp.ne.s32.totalorder %s24, %s25
    %p36 = scmp.eq.s32.totalorder %s16, 0
    %p37 = por %p35, %p36
    %p38 = scmp.ne.s32.totalorder %s24, %s25
    %p39 = scmp.eq.s32.totalorder %s17, 1
    %p40 = por %p38, %p39
    %p42 = scmp.ne.s32.totalorder %s25, %s41
    %p43 = scmp.eq.s32.totalorder %s17, 0
    %p44 = por %p42, %p43
    %s46 = sadd.s32 %s45, 1
    %p49 = scmp.eq.s32.totalorder %s11, 1
    %p50 = scmp.ne.s32.totalorder %s45, %s47
    %p51 = scmp.eq.s32.totalorder %s11, 0
    %p52 = por %p50, %p51
    %p53 = scmp.ne.s32.totalorder %s45, %s47
    %p54 = scmp.eq.s32.totalorder %s16, 1
    %p55 = por %p53, %p54
    %p56 = scmp.ne.s32.totalorder %s47, %s48
    %p57 = scmp.eq.s32.totalorder %s16, 0
    %p58 = por %p56, %p57
    %p59 = scmp.ne.s32.totalorder %s47, %s48
    %p60 = scmp.eq.s32.totalorder %s17, 1
    %p61 = por %p59, %p60
    %p63 = scmp.ne.s32.totalorder %s48, %s62
    %p64 = scmp.eq.s32.totalorder %s17, 0
    %p65 = por %p63, %p64
    %s66 = ssub.s32 %s11, %s18
    %p67 = scmp.eq.s32.totalorder %s66, 0
    %s69 = sadd.s32 %s68, 1
    %s70 = scalar_select %p67, %s68, %s69
    %p73 = pneg %p67
    %p74 = scmp.eq.s32.totalorder %s11, 1
    %p75 = por %p73, %p74
    %p76 = scmp.ne.s32.totalorder %s68, %s71
    %p77 = scmp.eq.s32.totalorder %s11, 0
    %p78 = por %p76, %p77
    %p79 = scmp.ne.s32.totalorder %s68, %s71
    %p80 = scmp.eq.s32.totalorder %s16, 1
    %p81 = por %p79, %p80
    %p82 = scmp.ne.s32.totalorder %s71, %s72
    %p83 = scmp.eq.s32.totalorder %s16, 0
    %p84 = por %p82, %p83
    %p85 = scmp.ne.s32.totalorder %s71, %s72
    %p86 = scmp.eq.s32.totalorder %s17, 1
    %p87 = por %p85, %p86
    %p89 = scmp.ne.s32.totalorder %s72, %s88
    %p90 = scmp.eq.s32.totalorder %s17, 0
    %p91 = por %p89, %p90
    %s92 = ssub.s32 %s11, %s18
    %p93 = scmp.eq.s32.totalorder %s92, 0
    %s95 = sadd.s32 %s94, 1
    %s96 = scalar_select %p93, %s94, %s95
    %p99 = pneg %p93
    %p100 = scmp.eq.s32.totalorder %s11, 1
    %p101 = por %p99, %p100
    %p102 = scmp.ne.s32.totalorder %s94, %s97
    %p103 = scmp.eq.s32.totalorder %s11, 0
    %p104 = por %p102, %p103
    %p105 = scmp.ne.s32.totalorder %s94, %s97
    %p106 = scmp.eq.s32.totalorder %s16, 1
    %p107 = por %p105, %p106
    %p108 = scmp.ne.s32.totalorder %s97, %s98
    %p109 = scmp.eq.s32.totalorder %s16, 0
    %p110 = por %p108, %p109
    %p111 = scmp.ne.s32.totalorder %s97, %s98
    %p112 = scmp.eq.s32.totalorder %s17, 1
    %p113 = por %p111, %p112
    %p115 = scmp.ne.s32.totalorder %s98, %s114
    %p116 = scmp.eq.s32.totalorder %s17, 0
    %p117 = por %p115, %p116
    %s118 = ssub.s32 %s11, %s18
    %p119 = scmp.eq.s32.totalorder %s118, 0
    %s121 = sadd.s32 %s120, 1
    %s122 = scalar_select %p119, %s120, %s121
    %p125 = pneg %p119
    %p126 = scmp.eq.s32.totalorder %s11, 1
    %p127 = por %p125, %p126
    %p128 = scmp.ne.s32.totalorder %s120, %s123
    %p129 = scmp.eq.s32.totalorder %s11, 0
    %p130 = por %p128, %p129
    %p131 = scmp.ne.s32.totalorder %s120, %s123
    %p132 = scmp.eq.s32.totalorder %s16, 1
    %p133 = por %p131, %p132
    %p134 = scmp.ne.s32.totalorder %s123, %s124
    %p135 = scmp.eq.s32.totalorder %s16, 0
    %p136 = por %p134, %p135
    %p137 = scmp.ne.s32.totalorder %s123, %s124
    %p138 = scmp.eq.s32.totalorder %s17, 1
    %p139 = por %p137, %p138
    %p141 = scmp.ne.s32.totalorder %s124, %s140
    %p142 = scmp.eq.s32.totalorder %s17, 0
    %p143 = por %p141, %p142
    %p144 = scmp.le.s32.totalorder 1, %s11
    %p145 = scmp.lt.s32.totalorder %s11, 3
    %p146 = pnand %p144, %p145
    %p147 = pneg %p146
    // Predicated region
    $region9: #{residual_block_forward.4} parent=5 // pred_check
      _
    $region10: #{residual_block_forward.4} parent=5 // pred_check_branch
      %149 = sbr.rel (%p146) target = $region12
    $region11: #{residual_block_forward.4} parent=5 // pred_region
      %s150 = ssub.s32 %s11, 1
      // Predicated region
      $region13: #{residual_block_forward.4} parent=11 // pred_check
        %p151 = pneg %p58
      $region14: #{residual_block_forward.4} parent=11 // pred_check_branch
        %153 = sbr.rel (%p151) target = $region16
      $region15: #{residual_block_forward.4} parent=11 // pred_region
        _
      $region16: #{residual_block_forward.4} parent=11 // pred_fallthru
        _
    $region12: #{residual_block_forward.4} parent=5 // pred_fallthru
      _
    %p154 = scmp.lt.s32.totalorder %s11, 2
    // Predicated region
    $region17: #{residual_block_forward.4} parent=5 // pred_check
      %p155 = pneg %p154
    $region18: #{residual_block_forward.4} parent=5 // pred_check_branch
      %157 = sbr.rel (%p155) target = $region20
    $region19: #{residual_block_forward.4} parent=5 // pred_region
      // Predicated region
      $region21: #{residual_block_forward.4} parent=19 // pred_check
        %p158 = pneg %p31
      $region22: #{residual_block_forward.4} parent=19 // pred_check_branch
        %160 = sbr.rel (%p158) target = $region24
      $region23: #{residual_block_forward.4} parent=19 // pred_region
        %s161 = smul.u32 8, %s11
        %p162 = scmp.lt.s32.totalorder %s161, 15
        %s163 = scalar_select %p162, %s161, 15
        %s164 = smul.addr %s163, 4
        %s165 = scalar_lea.vmem %s0, %s164
        %s166 = smul.u32 8, %s11
      $region24: #{residual_block_forward.4} parent=19 // pred_fallthru
        _
    $region20: #{residual_block_forward.4} parent=5 // pred_fallthru
      _
    %p167 = scmp.le.s32.totalorder 1, %s11
    %p168 = scmp.lt.s32.totalorder %s11, 3
    %p169 = pnand %p167, %p168
    %p170 = pneg %p169
    // Predicated region
    $region25: #{residual_block_forward.4} parent=5 // pred_check
      _
    $region26: #{residual_block_forward.4} parent=5 // pred_check_branch
      %172 = sbr.rel (%p169) target = $region28
    $region27: #{residual_block_forward.4} parent=5 // pred_region
      %s173 = ssub.s32 %s11, 1
      %s174 = smul.u32 8, %s16
      %p175 = scmp.lt.s32.totalorder %s174, 15
      %s176 = scalar_select %p175, %s174, 15
      %s177 = smul.addr %s176, 4
      %s178 = scalar_lea.vmem %s0, %s177
      %p179 = pneg %p37
      %p180 = pneg %p34
      %p181 = pneg %p58
      %p182 = pneg %p55
      %p183 = pneg %p84
      %p184 = pneg %p81
      %s185 = smul.u32 8, %s16
      %p186 = scmp.lt.s32.totalorder %s185, 15
      %s187 = scalar_select %p186, %s185, 15
      %s188 = smul.addr %s187, 4
      %s189 = scalar_lea.vmem %s2, %s188
      %p190 = pneg %p110
      %p191 = pneg %p107
      %p192 = scmp.lt.s32.totalorder %s16, 1
      %s193 = scalar_select %p192, %s16, 1
      %s194 = smul.addr %s193, 8
      %s195 = scalar_lea.vmem %s3, %s194
      %p196 = pneg %p136
      %p197 = pneg %p133
      %p198 = scmp.lt.s32.totalorder %s16, 1
      %s199 = scalar_select %p198, %s16, 1
      %s200 = smul.addr %s199, 8
      %s201 = scalar_lea.vmem %s4, %s200
      %s202 = smul.u32 8, %s16
      %p203 = scmp.lt.s32.totalorder %s202, 15
      %s204 = scalar_select %p203, %s202, 15
      %s205 = smul.addr %s204, 4
      %s206 = scalar_lea.vmem %s0, %s205
      %s207 = smul.u32 8, %s16
      %s208 = smul.u32 8, %s16
      %p209 = scmp.lt.s32.totalorder %s208, 15
      %s210 = scalar_select %p209, %s208, 15
      %s211 = smul.addr %s210, 4
      %s212 = scalar_lea.vmem %s2, %s211
      %s213 = smul.u32 8, %s16
      %p214 = scmp.lt.s32.totalorder %s16, 1
      %s215 = scalar_select %p214, %s16, 1
      %s216 = smul.addr %s215, 8
      %s217 = scalar_lea.vmem %s3, %s216
      %p218 = scmp.lt.s32.totalorder %s16, 1
      %s219 = scalar_select %p218, %s16, 1
      %s220 = smul.addr %s219, 8
      %s221 = scalar_lea.vmem %s4, %s220
      %v223 = vld [vmem:[%s206] sm:$0xf]
      %v224 = vld [vmem:[%s206 + $0x4] sm:$0xf]
      %v225 = vld [vmem:[%s206 + $0x8] sm:$0xf]
      %v226 = vld [vmem:[%s206 + $0xc] sm:$0xf]
      %v227 = vld [vmem:[%s206 + $0x10] sm:$0xf]
      %v228 = vld [vmem:[%s206 + $0x14] sm:$0xf]
      %v229 = vld [vmem:[%s206 + $0x18] sm:$0xf]
      %v230 = vld [vmem:[%s206 + $0x1c] sm:$0xf]
      %v231 = vld [vmem:[%s1] sm:$0xf]
      %v232 = vld [vmem:[%s1 + $0x4] sm:$0xf]
      %v233 = vld [vmem:[%s1 + $0x8] sm:$0xf]
      %v234 = vld [vmem:[%s1 + $0xc] sm:$0xf]
      %v235 = vld [vmem:[%s1 + $0x10] sm:$0xf]
      %v236 = vld [vmem:[%s1 + $0x14] sm:$0xf]
      %v237 = vld [vmem:[%s1 + $0x18] sm:$0xf]
      %v238 = vld [vmem:[%s1 + $0x1c] sm:$0xf]
      %v239 = vld [vmem:[%s1 + $0x20] sm:$0xf]
      %v240 = vld [vmem:[%s1 + $0x24] sm:$0xf]
      %v241 = vld [vmem:[%s1 + $0x28] sm:$0xf]
      %v242 = vld [vmem:[%s1 + $0x2c] sm:$0xf]
      %v243 = vld [vmem:[%s1 + $0x30] sm:$0xf]
      %v244 = vld [vmem:[%s1 + $0x34] sm:$0xf]
      %v245 = vld [vmem:[%s1 + $0x38] sm:$0xf]
      %v246 = vld [vmem:[%s1 + $0x3c] sm:$0xf]
      %v255 = vunpack.c.l.b16 %v223
      %v256 = vunpack.c.l.b16 %v224
      %v257 = vunpack.c.l.b16 %v225
      %v258 = vunpack.c.l.b16 %v226
      %v259 = vunpack.c.l.b16 %v227
      %v260 = vunpack.c.l.b16 %v228
      %v261 = vunpack.c.l.b16 %v229
      %v262 = vunpack.c.l.b16 %v230
      %v263 = vpack.c.b16 %v256, %v255
      %v264 = vpack.c.b16 %v258, %v257
      %v265 = vpack.c.b16 %v260, %v259
      %v266 = vpack.c.b16 %v262, %v261
      %v287 = vunpack.c.l.b16 %v231
      %v288 = vunpack.c.l.b16 %v232
      %v289 = vunpack.c.l.b16 %v233
      %v290 = vunpack.c.l.b16 %v234
      %v291 = vunpack.c.l.b16 %v235
      %v292 = vunpack.c.l.b16 %v236
      %v293 = vunpack.c.l.b16 %v237
      %v294 = vunpack.c.l.b16 %v238
      %v295 = vunpack.c.l.b16 %v239
      %v296 = vunpack.c.l.b16 %v240
      %v297 = vunpack.c.l.b16 %v241
      %v298 = vunpack.c.l.b16 %v242
      %v299 = vunpack.c.l.b16 %v243
      %v300 = vunpack.c.l.b16 %v244
      %v301 = vunpack.c.l.b16 %v245
      %v302 = vunpack.c.l.b16 %v246
      %v303 = vpack.c.b16 %v288, %v287
      %v304 = vpack.c.b16 %v290, %v289
      %v305 = vpack.c.b16 %v292, %v291
      %v306 = vpack.c.b16 %v294, %v293
      %v307 = vpack.c.b16 %v296, %v295
      %v308 = vpack.c.b16 %v298, %v297
      %v309 = vpack.c.b16 %v300, %v299
      %v310 = vpack.c.b16 %v302, %v301
      %319 = vmatprep.subr.bf16.mxu0 0
      %320 = vmatpush1.bf16.msra.mxu0 %v303
      %321 = vmatprep.subr.bf16.mxu0 0
      %322 = vmatpush1.bf16.msra.mxu0 %v304
      %323 = vmatprep.subr.bf16.mxu0 0
      %324 = vmatpush1.bf16.msra.mxu0 %v305
      %325 = vmatprep.subr.bf16.mxu0 0
      %326 = vmatpush1.bf16.msra.mxu0 %v306
      %327 = vmatprep.subr.bf16.mxu0 0
      %328 = vmatpush1.bf16.msra.mxu0 %v307
      %329 = vmatprep.subr.bf16.mxu0 0
      %330 = vmatpush1.bf16.msra.mxu0 %v308
      %331 = vmatprep.subr.bf16.mxu0 0
      %332 = vmatpush1.bf16.msra.mxu0 %v309
      %333 = vmatprep.subr.bf16.mxu0 0
      %334 = vmatpush1.bf16.msra.mxu0 %v310
      %335 = vmatprep.subr.bf16.mxu0 0
      %336 = vmatpush1.bf16.msra.mxu0 0
      %337 = vmatprep.subr.bf16.mxu0 0
      %338 = vmatpush1.bf16.msra.mxu0 0
      %339 = vmatprep.subr.bf16.mxu0 0
      %340 = vmatpush1.bf16.msra.mxu0 0
      %341 = vmatprep.subr.bf16.mxu0 0
      %342 = vmatpush1.bf16.msra.mxu0 0
      %343 = vmatprep.subr.bf16.mxu0 0
      %344 = vmatpush1.bf16.msra.mxu0 0
      %345 = vmatprep.subr.bf16.mxu0 0
      %346 = vmatpush1.bf16.msra.mxu0 0
      %347 = vmatprep.subr.bf16.mxu0 0
      %348 = vmatpush1.bf16.msra.mxu0 0
      %349 = vmatprep.subr.bf16.mxu0 0
      %350 = vmatpush1.bf16.msra.mxu0 0
      %351 = vmatprep.mubr.bf16.mxu0 0
      %352 = vmatmul.mubr.bf16.gmra.mrb[0].mxu0 %v263
      %v353 = vpop.f32.mrb[0].mxu0
      %v354 = vadd.f32 0.0, %v353
      %v355 = vpop.f32.mrb[0].mxu0
      %v356 = vpop.f32.mrb[0].mxu0
      %v357 = vadd.f32 0.0, %v356
      %v358 = vpop.f32.mrb[0].mxu0
      %359 = vmatprep.mubr.bf16.mxu0 0
      %360 = vmatmul.mubr.bf16.gmra.mrb[0].mxu0 %v264
      %v361 = vpop.f32.mrb[0].mxu0
      %v362 = vadd.f32 0.0, %v361
      %v363 = vpop.f32.mrb[0].mxu0
      %v364 = vpop.f32.mrb[0].mxu0
      %v365 = vadd.f32 0.0, %v364
      %v366 = vpop.f32.mrb[0].mxu0
      %367 = vmatprep.mubr.bf16.mxu0 0
      %368 = vmatmul.mubr.bf16.gmra.mrb[0].mxu0 %v265
      %v369 = vpop.f32.mrb[0].mxu0
      %v370 = vadd.f32 0.0, %v369
      %v371 = vpop.f32.mrb[0].mxu0
      %v372 = vpop.f32.mrb[0].mxu0
      %v373 = vadd.f32 0.0, %v372
      %v374 = vpop.f32.mrb[0].mxu0
      %375 = vmatprep.mubr.bf16.mxu0 0
      %376 = vmatmul.mubr.bf16.gmra.mrb[0].mxu0 %v266
      %v377 = vpop.f32.mrb[0].mxu0
      %v378 = vadd.f32 0.0, %v377
      %v379 = vpop.f32.mrb[0].mxu0
      %v380 = vpop.f32.mrb[0].mxu0
      %v381 = vadd.f32 0.0, %v380
      %v382 = vpop.f32.mrb[0].mxu0
      %383 = vdwg.mxu0
      %v384 = vpack.c.bf16 %v357, %v354
      %v385 = vpack.c.bf16 %v365, %v362
      %v386 = vpack.c.bf16 %v373, %v370
      %v387 = vpack.c.bf16 %v381, %v378
      %v392 = vunpack.c.l.b16 %v384
      %v393 = vunpack.c.h.b16 %v384
      %v394 = vunpack.c.l.b16 %v385
      %v395 = vunpack.c.h.b16 %v385
      %v396 = vunpack.c.l.b16 %v386
      %v397 = vunpack.c.h.b16 %v386
      %v398 = vunpack.c.l.b16 %v387
      %v399 = vunpack.c.h.b16 %v387
      %v400 = vpack.c.b16 %v392, %v392
      %v401 = vpack.c.b16 %v393, %v393
      %v402 = vpack.c.b16 %v394, %v394
      %v403 = vpack.c.b16 %v395, %v395
      %v404 = vpack.c.b16 %v396, %v396
      %v405 = vpack.c.b16 %v397, %v397
      %v406 = vpack.c.b16 %v398, %v398
      %v407 = vpack.c.b16 %v399, %v399
      %416 = vst [vmem:[%s212] sm:$0xf] %v400
      %417 = vst [vmem:[%s212 + $0x4] sm:$0xf] %v401
      %418 = vst [vmem:[%s212 + $0x8] sm:$0xf] %v402
      %419 = vst [vmem:[%s212 + $0xc] sm:$0xf] %v403
      %420 = vst [vmem:[%s212 + $0x10] sm:$0xf] %v404
      %421 = vst [vmem:[%s212 + $0x14] sm:$0xf] %v405
      %422 = vst [vmem:[%s212 + $0x18] sm:$0xf] %v406
      %423 = vst [vmem:[%s212 + $0x1c] sm:$0xf] %v407
      %v424 = vadd.f32 %v354, %v357
      %v425 = vadd.f32 %v424, %v362
      %v426 = vadd.f32 %v425, %v365
      %v427 = vadd.f32 %v426, %v370
      %v428 = vadd.f32 %v427, %v373
      %v429 = vadd.f32 %v428, %v378
      %v430 = vadd.f32 %v429, %v381
      %431 = vst [vmem:[%s217] sm:$0xff] %v430
      %v432 = vmul.f32 %v354, %v354
      %v433 = vmul.f32 %v357, %v357
      %v434 = vmul.f32 %v362, %v362
      %v435 = vmul.f32 %v365, %v365
      %v436 = vmul.f32 %v370, %v370
      %v437 = vmul.f32 %v373, %v373
      %v438 = vmul.f32 %v378, %v378
      %v439 = vmul.f32 %v381, %v381
      %v440 = vadd.f32 %v432, %v433
      %v441 = vadd.f32 %v440, %v434
      %v442 = vadd.f32 %v441, %v435
      %v443 = vadd.f32 %v442, %v436
      %v444 = vadd.f32 %v443, %v437
      %v445 = vadd.f32 %v444, %v438
      %v446 = vadd.f32 %v445, %v439
      %447 = vst [vmem:[%s221] sm:$0xff] %v446
      %s448 = smul.u32 8, %s16
      %p449 = scmp.lt.s32.totalorder %s448, 15
      %s450 = scalar_select %p449, %s448, 15
      %s451 = smul.addr %s450, 4
      %s452 = scalar_lea.vmem %s2, %s451
      %p453 = scmp.lt.s32.totalorder %s16, 1
      %s454 = scalar_select %p453, %s16, 1
      %s455 = smul.addr %s454, 8
      %s456 = scalar_lea.vmem %s3, %s455
      %p457 = scmp.lt.s32.totalorder %s16, 1
      %s458 = scalar_select %p457, %s16, 1
      %s459 = smul.addr %s458, 8
      %s460 = scalar_lea.vmem %s4, %s459
      // Predicated region
      $region29: #{residual_block_forward.4} parent=27 // pred_check
        %p461 = pneg %p81
      $region30: #{residual_block_forward.4} parent=27 // pred_check_branch
        %463 = sbr.rel (%p461) target = $region32
      $region31: #{residual_block_forward.4} parent=27 // pred_region
        %s464 = smul.u32 8, %s16
      $region32: #{residual_block_forward.4} parent=27 // pred_fallthru
        _
      // Predicated region
      $region33: #{residual_block_forward.4} parent=27 // pred_check
        %p465 = pneg %p107
      $region34: #{residual_block_forward.4} parent=27 // pred_check_branch
        %467 = sbr.rel (%p465) target = $region36
      $region35: #{residual_block_forward.4} parent=27 // pred_region
        _
      $region36: #{residual_block_forward.4} parent=27 // pred_fallthru
        _
      // Predicated region
      $region37: #{residual_block_forward.4} parent=27 // pred_check
        %p468 = pneg %p133
      $region38: #{residual_block_forward.4} parent=27 // pred_check_branch
        %470 = sbr.rel (%p468) target = $region40
      $region39: #{residual_block_forward.4} parent=27 // pred_region
        _
      $region40: #{residual_block_forward.4} parent=27 // pred_fallthru
        _
    $region28: #{residual_block_forward.4} parent=5 // pred_fallthru
      _
    %p471 = scmp.le.s32.totalorder 2, %s11
    // Predicated region
    $region41: #{residual_block_forward.4} parent=5 // pred_check
      %p472 = pneg %p471
    $region42: #{residual_block_forward.4} parent=5 // pred_check_branch
      %474 = sbr.rel (%p472) target = $region44
    $region43: #{residual_block_forward.4} parent=5 // pred_region
      %s475 = ssub.s32 %s11, 2
      // Predicated region
      $region45: #{residual_block_forward.4} parent=43 // pred_check
        %p476 = pneg %p87
      $region46: #{residual_block_forward.4} parent=43 // pred_check_branch
        %478 = sbr.rel (%p476) target = $region48
      $region47: #{residual_block_forward.4} parent=43 // pred_region
        %s479 = smul.u32 8, %s17
        %p480 = scmp.lt.s32.totalorder %s479, 15
        %s481 = scalar_select %p480, %s479, 15
        %s482 = smul.addr %s481, 4
        %s483 = scalar_lea.vmem %s2, %s482
      $region48: #{residual_block_forward.4} parent=43 // pred_fallthru
        _
      // Predicated region
      $region49: #{residual_block_forward.4} parent=43 // pred_check
        %p484 = pneg %p113
      $region50: #{residual_block_forward.4} parent=43 // pred_check_branch
        %486 = sbr.rel (%p484) target = $region52
      $region51: #{residual_block_forward.4} parent=43 // pred_region
        %p487 = scmp.lt.s32.totalorder %s17, 1
        %s488 = scalar_select %p487, %s17, 1
        %s489 = smul.addr %s488, 8
        %s490 = scalar_lea.vmem %s3, %s489
      $region52: #{residual_block_forward.4} parent=43 // pred_fallthru
        _
      // Predicated region
      $region53: #{residual_block_forward.4} parent=43 // pred_check
        %p491 = pneg %p139
      $region54: #{residual_block_forward.4} parent=43 // pred_check_branch
        %493 = sbr.rel (%p491) target = $region56
      $region55: #{residual_block_forward.4} parent=43 // pred_region
        %p494 = scmp.lt.s32.totalorder %s17, 1
        %s495 = scalar_select %p494, %s17, 1
        %s496 = smul.addr %s495, 8
        %s497 = scalar_lea.vmem %s4, %s496
      $region56: #{residual_block_forward.4} parent=43 // pred_fallthru
        _
    $region44: #{residual_block_forward.4} parent=5 // pred_fallthru
      _
  $region6: #{residual_block_forward.4} parent=0 // loop_footer
    %s15 = sadd.s32 1, %s11
  $region7: #{residual_block_forward.4} parent=0 // loop_footer_branch
    %10 = sbr.rel target = $region3
  $region8: #{residual_block_forward.4} parent=0 // loop_exit
    _

// kernel: residual_block_forward.7
$region0: #{residual_block_forward.7}
  #allocation0 [shape = 'u32[]', space=smem, size = 0x4, offset = 0x4, fixed_abs, tag = 'smem constant byte address 0x4 - core index']
  #allocation1 [shape = 'u32[144,128]{1,0:T(1,128)}', space=vmem, size = 0x12000, scoped, tag = 'internal scratch']
  %s0 = inlined_call_operand.vmem [shape: bf16[128,128], index: 0, kind: input, shape index: {}]
  %s1 = inlined_call_operand.vmem [shape: f32[1,128], index: 1, kind: input, shape index: {}]
  %s2 = inlined_call_operand.vmem [shape: f32[1,128], index: 2, kind: input, shape index: {}]
  %s3 = inlined_call_operand.vmem [shape: bf16[128,128], index: 3, kind: input, shape index: {}]
  %s4 = inlined_call_operand.vmem [shape: bf16[128,128], index: 4, kind: input, shape index: {}]
  %s5 = inlined_call_operand.vmem [shape: f32[1,128], index: 5, kind: input, shape index: {}]
  %s6 = inlined_call_operand.vmem [shape: f32[1,128], index: 6, kind: input, shape index: {}]
  %s7 = inlined_call_operand.vmem [shape: f32[128,128], index: 7, kind: output, shape index: {}]
  %s8 = sld [smem:[#allocation0]]
  $region61: #{residual_block_forward.7} parent=0
    _
  %s10 = ssub.s32 1, %s8
  %s11 = scalar_select 0, %s10, %s8
  loop: start=0, step=1, limit=4
  $region2: #{residual_block_forward.7} parent=0 // loop_pre_header
    _
  $region3: #{residual_block_forward.7} parent=0 // loop_header
    %s13 = sphi 0, %s17
    %p14 = scmp.ge.s32.totalorder %s13, 4
    %s23 = sphi 0, %s25
    %s26 = sphi 0, %s23
    %s27 = sphi 0, %s26
    %s43 = sphi 0, %s27
    %s47 = sphi 0, %s47
    %s49 = sphi 0, %s47
    %s50 = sphi 0, %s49
    %s64 = sphi 0, %s50
    %s68 = sphi 0, %s68
    %s70 = sphi 0, %s68
    %s71 = sphi 0, %s70
    %s85 = sphi 0, %s71
    %s91 = sphi 0, %s93
    %s94 = sphi 0, %s91
    %s95 = sphi 0, %s94
    %s111 = sphi 0, %s95
    %s115 = sphi 0, %s115
    %s117 = sphi 0, %s115
    %s118 = sphi 0, %s117
    %s132 = sphi 0, %s118
    %s136 = sphi 0, %s136
    %s138 = sphi 0, %s136
    %s139 = sphi 0, %s138
    %s153 = sphi 0, %s139
    %s157 = sphi 0, %s157
    %s159 = sphi 0, %s157
    %s160 = sphi 0, %s159
    %s174 = sphi 0, %s160
    %s180 = sphi 0, %s182
    %s183 = sphi 0, %s180
    %s184 = sphi 0, %s183
    %s200 = sphi 0, %s184
  $region4: #{residual_block_forward.7} parent=0 // loop_header_branch
    %16 = sbr.rel (%p14) target = $region8
  $region5: #{residual_block_forward.7} parent=0 // loop_body
    %s18 = ssub.s32 %s13, 1
    %s19 = ssub.s32 %s13, 2
    %s20 = sadd.s32 %s13, 1
    %s21 = ssub.s32 %s13, %s20
    %p22 = scmp.eq.s32.totalorder %s21, 0
    %s24 = sadd.s32 %s23, 1
    %s25 = scalar_select %p22, %s23, %s24
    %p28 = pneg %p22
    %p29 = scmp.eq.s32.totalorder %s13, 1
    %p30 = por %p28, %p29
    %p31 = scmp.ne.s32.totalorder %s23, %s26
    %p32 = scmp.eq.s32.totalorder %s13, 0
    %p33 = por %p31, %p32
    %p34 = scmp.ne.s32.totalorder %s23, %s26
    %p35 = scmp.eq.s32.totalorder %s18, 1
    %p36 = por %p34, %p35
    %p37 = scmp.ne.s32.totalorder %s26, %s27
    %p38 = scmp.eq.s32.totalorder %s18, 0
    %p39 = por %p37, %p38
    %p40 = scmp.ne.s32.totalorder %s26, %s27
    %p41 = scmp.eq.s32.totalorder %s19, 1
    %p42 = por %p40, %p41
    %p44 = scmp.ne.s32.totalorder %s27, %s43
    %p45 = scmp.eq.s32.totalorder %s19, 0
    %p46 = por %p44, %p45
    %s48 = sadd.s32 %s47, 1
    %p51 = scmp.eq.s32.totalorder %s13, 1
    %p52 = scmp.ne.s32.totalorder %s47, %s49
    %p53 = scmp.eq.s32.totalorder %s13, 0
    %p54 = por %p52, %p53
    %p55 = scmp.ne.s32.totalorder %s47, %s49
    %p56 = scmp.eq.s32.totalorder %s18, 1
    %p57 = por %p55, %p56
    %p58 = scmp.ne.s32.totalorder %s49, %s50
    %p59 = scmp.eq.s32.totalorder %s18, 0
    %p60 = por %p58, %p59
    %p61 = scmp.ne.s32.totalorder %s49, %s50
    %p62 = scmp.eq.s32.totalorder %s19, 1
    %p63 = por %p61, %p62
    %p65 = scmp.ne.s32.totalorder %s50, %s64
    %p66 = scmp.eq.s32.totalorder %s19, 0
    %p67 = por %p65, %p66
    %s69 = sadd.s32 %s68, 1
    %p72 = scmp.eq.s32.totalorder %s13, 1
    %p73 = scmp.ne.s32.totalorder %s68, %s70
    %p74 = scmp.eq.s32.totalorder %s13, 0
    %p75 = por %p73, %p74
    %p76 = scmp.ne.s32.totalorder %s68, %s70
    %p77 = scmp.eq.s32.totalorder %s18, 1
    %p78 = por %p76, %p77
    %p79 = scmp.ne.s32.totalorder %s70, %s71
    %p80 = scmp.eq.s32.totalorder %s18, 0
    %p81 = por %p79, %p80
    %p82 = scmp.ne.s32.totalorder %s70, %s71
    %p83 = scmp.eq.s32.totalorder %s19, 1
    %p84 = por %p82, %p83
    %p86 = scmp.ne.s32.totalorder %s71, %s85
    %p87 = scmp.eq.s32.totalorder %s19, 0
    %p88 = por %p86, %p87
    %s89 = ssub.s32 %s13, %s20
    %p90 = scmp.eq.s32.totalorder %s89, 0
    %s92 = sadd.s32 %s91, 1
    %s93 = scalar_select %p90, %s91, %s92
    %p96 = pneg %p90
    %p97 = scmp.eq.s32.totalorder %s13, 1
    %p98 = por %p96, %p97
    %p99 = scmp.ne.s32.totalorder %s91, %s94
    %p100 = scmp.eq.s32.totalorder %s13, 0
    %p101 = por %p99, %p100
    %p102 = scmp.ne.s32.totalorder %s91, %s94
    %p103 = scmp.eq.s32.totalorder %s18, 1
    %p104 = por %p102, %p103
    %p105 = scmp.ne.s32.totalorder %s94, %s95
    %p106 = scmp.eq.s32.totalorder %s18, 0
    %p107 = por %p105, %p106
    %p108 = scmp.ne.s32.totalorder %s94, %s95
    %p109 = scmp.eq.s32.totalorder %s19, 1
    %p110 = por %p108, %p109
    %p112 = scmp.ne.s32.totalorder %s95, %s111
    %p113 = scmp.eq.s32.totalorder %s19, 0
    %p114 = por %p112, %p113
    %s116 = sadd.s32 %s115, 1
    %p119 = scmp.eq.s32.totalorder %s13, 1
    %p120 = scmp.ne.s32.totalorder %s115, %s117
    %p121 = scmp.eq.s32.totalorder %s13, 0
    %p122 = por %p120, %p121
    %p123 = scmp.ne.s32.totalorder %s115, %s117
    %p124 = scmp.eq.s32.totalorder %s18, 1
    %p125 = por %p123, %p124
    %p126 = scmp.ne.s32.totalorder %s117, %s118
    %p127 = scmp.eq.s32.totalorder %s18, 0
    %p128 = por %p126, %p127
    %p129 = scmp.ne.s32.totalorder %s117, %s118
    %p130 = scmp.eq.s32.totalorder %s19, 1
    %p131 = por %p129, %p130
    %p133 = scmp.ne.s32.totalorder %s118, %s132
    %p134 = scmp.eq.s32.totalorder %s19, 0
    %p135 = por %p133, %p134
    %s137 = sadd.s32 %s136, 1
    %p140 = scmp.eq.s32.totalorder %s13, 1
    %p141 = scmp.ne.s32.totalorder %s136, %s138
    %p142 = scmp.eq.s32.totalorder %s13, 0
    %p143 = por %p141, %p142
    %p144 = scmp.ne.s32.totalorder %s136, %s138
    %p145 = scmp.eq.s32.totalorder %s18, 1
    %p146 = por %p144, %p145
    %p147 = scmp.ne.s32.totalorder %s138, %s139
    %p148 = scmp.eq.s32.totalorder %s18, 0
    %p149 = por %p147, %p148
    %p150 = scmp.ne.s32.totalorder %s138, %s139
    %p151 = scmp.eq.s32.totalorder %s19, 1
    %p152 = por %p150, %p151
    %p154 = scmp.ne.s32.totalorder %s139, %s153
    %p155 = scmp.eq.s32.totalorder %s19, 0
    %p156 = por %p154, %p155
    %s158 = sadd.s32 %s157, 1
    %p161 = scmp.eq.s32.totalorder %s13, 1
    %p162 = scmp.ne.s32.totalorder %s157, %s159
    %p163 = scmp.eq.s32.totalorder %s13, 0
    %p164 = por %p162, %p163
    %p165 = scmp.ne.s32.totalorder %s157, %s159
    %p166 = scmp.eq.s32.totalorder %s18, 1
    %p167 = por %p165, %p166
    %p168 = scmp.ne.s32.totalorder %s159, %s160
    %p169 = scmp.eq.s32.totalorder %s18, 0
    %p170 = por %p168, %p169
    %p171 = scmp.ne.s32.totalorder %s159, %s160
    %p172 = scmp.eq.s32.totalorder %s19, 1
    %p173 = por %p171, %p172
    %p175 = scmp.ne.s32.totalorder %s160, %s174
    %p176 = scmp.eq.s32.totalorder %s19, 0
    %p177 = por %p175, %p176
    %s178 = ssub.s32 %s13, %s20
    %p179 = scmp.eq.s32.totalorder %s178, 0
    %s181 = sadd.s32 %s180, 1
    %s182 = scalar_select %p179, %s180, %s181
    %p185 = pneg %p179
    %p186 = scmp.eq.s32.totalorder %s13, 1
    %p187 = por %p185, %p186
    %p188 = scmp.ne.s32.totalorder %s180, %s183
    %p189 = scmp.eq.s32.totalorder %s13, 0
    %p190 = por %p188, %p189
    %p191 = scmp.ne.s32.totalorder %s180, %s183
    %p192 = scmp.eq.s32.totalorder %s18, 1
    %p193 = por %p191, %p192
    %p194 = scmp.ne.s32.totalorder %s183, %s184
    %p195 = scmp.eq.s32.totalorder %s18, 0
    %p196 = por %p194, %p195
    %p197 = scmp.ne.s32.totalorder %s183, %s184
    %p198 = scmp.eq.s32.totalorder %s19, 1
    %p199 = por %p197, %p198
    %p201 = scmp.ne.s32.totalorder %s184, %s200
    %p202 = scmp.eq.s32.totalorder %s19, 0
    %p203 = por %p201, %p202
    %p204 = scmp.le.s32.totalorder 1, %s13
    %p205 = scmp.lt.s32.totalorder %s13, 3
    %p206 = pnand %p204, %p205
    %p207 = pneg %p206
    // Predicated region
    $region9: #{residual_block_forward.7} parent=5 // pred_check
      _
    $region10: #{residual_block_forward.7} parent=5 // pred_check_branch
      %209 = sbr.rel (%p206) target = $region12
    $region11: #{residual_block_forward.7} parent=5 // pred_region
      %s210 = ssub.s32 %s13, 1
      // Predicated region
      $region13: #{residual_block_forward.7} parent=11 // pred_check
        %p211 = pneg %p60
      $region14: #{residual_block_forward.7} parent=11 // pred_check_branch
        %213 = sbr.rel (%p211) target = $region16
      $region15: #{residual_block_forward.7} parent=11 // pred_region
        _
      $region16: #{residual_block_forward.7} parent=11 // pred_fallthru
        _
      // Predicated region
      $region17: #{residual_block_forward.7} parent=11 // pred_check
        %p214 = pneg %p81
      $region18: #{residual_block_forward.7} parent=11 // pred_check_branch
        %216 = sbr.rel (%p214) target = $region20
      $region19: #{residual_block_forward.7} parent=11 // pred_region
        _
      $region20: #{residual_block_forward.7} parent=11 // pred_fallthru
        _
      // Predicated region
      $region21: #{residual_block_forward.7} parent=11 // pred_check
        %p217 = pneg %p128
      $region22: #{residual_block_forward.7} parent=11 // pred_check_branch
        %219 = sbr.rel (%p217) target = $region24
      $region23: #{residual_block_forward.7} parent=11 // pred_region
        _
      $region24: #{residual_block_forward.7} parent=11 // pred_fallthru
        _
      // Predicated region
      $region25: #{residual_block_forward.7} parent=11 // pred_check
        %p220 = pneg %p149
      $region26: #{residual_block_forward.7} parent=11 // pred_check_branch
        %222 = sbr.rel (%p220) target = $region28
      $region27: #{residual_block_forward.7} parent=11 // pred_region
        _
      $region28: #{residual_block_forward.7} parent=11 // pred_fallthru
        _
      // Predicated region
      $region29: #{residual_block_forward.7} parent=11 // pred_check
        %p223 = pneg %p170
      $region30: #{residual_block_forward.7} parent=11 // pred_check_branch
        %225 = sbr.rel (%p223) target = $region32
      $region31: #{residual_block_forward.7} parent=11 // pred_region
        _
      $region32: #{residual_block_forward.7} parent=11 // pred_fallthru
        _
    $region12: #{residual_block_forward.7} parent=5 // pred_fallthru
      _
    %p226 = scmp.lt.s32.totalorder %s13, 2
    // Predicated region
    $region33: #{residual_block_forward.7} parent=5 // pred_check
      %p227 = pneg %p226
    $region34: #{residual_block_forward.7} parent=5 // pred_check_branch
      %229 = sbr.rel (%p227) target = $region36
    $region35: #{residual_block_forward.7} parent=5 // pred_region
      // Predicated region
      $region37: #{residual_block_forward.7} parent=35 // pred_check
        %p230 = pneg %p33
      $region38: #{residual_block_forward.7} parent=35 // pred_check_branch
        %232 = sbr.rel (%p230) target = $region40
      $region39: #{residual_block_forward.7} parent=35 // pred_region
        %s233 = smul.u32 8, %s13
        %p234 = scmp.lt.s32.totalorder %s233, 15
        %s235 = scalar_select %p234, %s233, 15
        %s236 = smul.addr %s235, 4
        %s237 = scalar_lea.vmem %s0, %s236
        %s238 = smul.u32 8, %s13
      $region40: #{residual_block_forward.7} parent=35 // pred_fallthru
        _
      // Predicated region
      $region41: #{residual_block_forward.7} parent=35 // pred_check
        %p239 = pneg %p101
      $region42: #{residual_block_forward.7} parent=35 // pred_check_branch
        %241 = sbr.rel (%p239) target = $region44
      $region43: #{residual_block_forward.7} parent=35 // pred_region
        %s242 = smul.u32 8, %s13
        %p243 = scmp.lt.s32.totalorder %s242, 15
        %s244 = scalar_select %p243, %s242, 15
        %s245 = smul.addr %s244, 4
        %s246 = scalar_lea.vmem %s3, %s245
        %s247 = smul.u32 8, %s13
      $region44: #{residual_block_forward.7} parent=35 // pred_fallthru
        _
    $region36: #{residual_block_forward.7} parent=5 // pred_fallthru
      _
    %p248 = scmp.le.s32.totalorder 1, %s13
    %p249 = scmp.lt.s32.totalorder %s13, 3
    %p250 = pnand %p248, %p249
    %p251 = pneg %p250
    // Predicated region
    $region45: #{residual_block_forward.7} parent=5 // pred_check
      _
    $region46: #{residual_block_forward.7} parent=5 // pred_check_branch
      %253 = sbr.rel (%p250) target = $region48
    $region47: #{residual_block_forward.7} parent=5 // pred_region
      %s254 = ssub.s32 %s13, 1
      %s255 = smul.u32 8, %s18
      %p256 = scmp.lt.s32.totalorder %s255, 15
      %s257 = scalar_select %p256, %s255, 15
      %s258 = smul.addr %s257, 4
      %s259 = scalar_lea.vmem %s0, %s258
      %p260 = pneg %p39
      %p261 = pneg %p36
      %p262 = pneg %p60
      %p263 = pneg %p57
      %p264 = pneg %p81
      %p265 = pneg %p78
      %s266 = smul.u32 8, %s18
      %p267 = scmp.lt.s32.totalorder %s266, 15
      %s268 = scalar_select %p267, %s266, 15
      %s269 = smul.addr %s268, 4
      %s270 = scalar_lea.vmem %s3, %s269
      %p271 = pneg %p107
      %p272 = pneg %p104
      %p273 = pneg %p128
      %p274 = pneg %p125
      %p275 = pneg %p149
      %p276 = pneg %p146
      %p277 = pneg %p170
      %p278 = pneg %p167
      %p279 = pneg %p196
      %p280 = pneg %p193
      %s281 = smul.u32 8, %s18
      %p282 = scmp.lt.s32.totalorder %s281, 15
      %s283 = scalar_select %p282, %s281, 15
      %s284 = smul.addr %s283, 8
      %s285 = scalar_lea.vmem %s7, %s284
      %s286 = smul.u32 8, %s18
      %p287 = scmp.lt.s32.totalorder %s286, 15
      %s288 = scalar_select %p287, %s286, 15
      %s289 = smul.addr %s288, 4
      %s290 = scalar_lea.vmem %s0, %s289
      %s291 = smul.u32 8, %s18
      %s292 = smul.u32 8, %s18
      %p293 = scmp.lt.s32.totalorder %s292, 15
      %s294 = scalar_select %p293, %s292, 15
      %s295 = smul.addr %s294, 4
      %s296 = scalar_lea.vmem %s3, %s295
      %s297 = smul.u32 8, %s18
      %s298 = smul.u32 8, %s18
      %p299 = scmp.lt.s32.totalorder %s298, 15
      %s300 = scalar_select %p299, %s298, 15
      %s301 = smul.addr %s300, 8
      %s302 = scalar_lea.vmem %s7, %s301
      %s303 = smul.u32 8, %s18
      %v305 = vld [vmem:[%s290] sm:$0xf]
      %v306 = vld [vmem:[%s290 + $0x4] sm:$0xf]
      %v307 = vld [vmem:[%s290 + $0x8] sm:$0xf]
      %v308 = vld [vmem:[%s290 + $0xc] sm:$0xf]
      %v309 = vld [vmem:[%s290 + $0x10] sm:$0xf]
      %v310 = vld [vmem:[%s290 + $0x14] sm:$0xf]
      %v311 = vld [vmem:[%s290 + $0x18] sm:$0xf]
      %v312 = vld [vmem:[%s290 + $0x1c] sm:$0xf]
      %v313 = vunpack.c.l.bf16 %v305
      %v314 = vunpack.c.l.bf16 %v306
      %v315 = vunpack.c.l.bf16 %v307
      %v316 = vunpack.c.l.bf16 %v308
      %v317 = vunpack.c.l.bf16 %v309
      %v318 = vunpack.c.l.bf16 %v310
      %v319 = vunpack.c.l.bf16 %v311
      %v320 = vunpack.c.l.bf16 %v312
      %v321 = vld [vmem:[%s1] sm:$0x1]
      %v323 = vlaneseq
      %v324 = vshrl.u32 %v323, 7
      %v325 = vsub.s32 0, %v324
      %v326 = vrot.slane %v321, %v325
      %v328 = vmul.f32 %v313, %v326
      %v329 = vmul.f32 %v314, %v326
      %v330 = vmul.f32 %v315, %v326
      %v331 = vmul.f32 %v316, %v326
      %v332 = vmul.f32 %v317, %v326
      %v333 = vmul.f32 %v318, %v326
      %v334 = vmul.f32 %v319, %v326
      %v335 = vmul.f32 %v320, %v326
      %v336 = vld [vmem:[%s2] sm:$0x1]
      %v338 = vlaneseq
      %v339 = vshrl.u32 %v338, 7
      %v340 = vsub.s32 0, %v339
      %v341 = vrot.slane %v336, %v340
      %v343 = vadd.f32 %v328, %v341
      %v344 = vadd.f32 %v329, %v341
      %v345 = vadd.f32 %v330, %v341
      %v346 = vadd.f32 %v331, %v341
      %v347 = vadd.f32 %v332, %v341
      %v348 = vadd.f32 %v333, %v341
      %v349 = vadd.f32 %v334, %v341
      %v350 = vadd.f32 %v335, %v341
      %v351 = vld [vmem:[%s296] sm:$0xf]
      %v352 = vld [vmem:[%s296 + $0x4] sm:$0xf]
      %v353 = vld [vmem:[%s296 + $0x8] sm:$0xf]
      %v354 = vld [vmem:[%s296 + $0xc] sm:$0xf]
      %v355 = vld [vmem:[%s296 + $0x10] sm:$0xf]
      %v356 = vld [vmem:[%s296 + $0x14] sm:$0xf]
      %v357 = vld [vmem:[%s296 + $0x18] sm:$0xf]
      %v358 = vld [vmem:[%s296 + $0x1c] sm:$0xf]
      %v359 = vld [vmem:[%s4] sm:$0xf]
      %v360 = vld [vmem:[%s4 + $0x4] sm:$0xf]
      %v361 = vld [vmem:[%s4 + $0x8] sm:$0xf]
      %v362 = vld [vmem:[%s4 + $0xc] sm:$0xf]
      %v363 = vld [vmem:[%s4 + $0x10] sm:$0xf]
      %v364 = vld [vmem:[%s4 + $0x14] sm:$0xf]
      %v365 = vld [vmem:[%s4 + $0x18] sm:$0xf]
      %v366 = vld [vmem:[%s4 + $0x1c] sm:$0xf]
      %v367 = vld [vmem:[%s4 + $0x20] sm:$0xf]
      %v368 = vld [vmem:[%s4 + $0x24] sm:$0xf]
      %v369 = vld [vmem:[%s4 + $0x28] sm:$0xf]
      %v370 = vld [vmem:[%s4 + $0x2c] sm:$0xf]
      %v371 = vld [vmem:[%s4 + $0x30] sm:$0xf]
      %v372 = vld [vmem:[%s4 + $0x34] sm:$0xf]
      %v373 = vld [vmem:[%s4 + $0x38] sm:$0xf]
      %v374 = vld [vmem:[%s4 + $0x3c] sm:$0xf]
      %v383 = vunpack.c.l.b16 %v351
      %v384 = vunpack.c.l.b16 %v352
      %v385 = vunpack.c.l.b16 %v353
      %v386 = vunpack.c.l.b16 %v354
      %v387 = vunpack.c.l.b16 %v355
      %v388 = vunpack.c.l.b16 %v356
      %v389 = vunpack.c.l.b16 %v357
      %v390 = vunpack.c.l.b16 %v358
      %v391 = vpack.c.b16 %v384, %v383
      %v392 = vpack.c.b16 %v386, %v385
      %v393 = vpack.c.b16 %v388, %v387
      %v394 = vpack.c.b16 %v390, %v389
      %v415 = vunpack.c.l.b16 %v359
      %v416 = vunpack.c.l.b16 %v360
      %v417 = vunpack.c.l.b16 %v361
      %v418 = vunpack.c.l.b16 %v362
      %v419 = vunpack.c.l.b16 %v363
      %v420 = vunpack.c.l.b16 %v364
      %v421 = vunpack.c.l.b16 %v365
      %v422 = vunpack.c.l.b16 %v366
      %v423 = vunpack.c.l.b16 %v367
      %v424 = vunpack.c.l.b16 %v368
      %v425 = vunpack.c.l.b16 %v369
      %v426 = vunpack.c.l.b16 %v370
      %v427 = vunpack.c.l.b16 %v371
      %v428 = vunpack.c.l.b16 %v372
      %v429 = vunpack.c.l.b16 %v373
      %v430 = vunpack.c.l.b16 %v374
      %v431 = vpack.c.b16 %v416, %v415
      %v432 = vpack.c.b16 %v418, %v417
      %v433 = vpack.c.b16 %v420, %v419
      %v434 = vpack.c.b16 %v422, %v421
      %v435 = vpack.c.b16 %v424, %v423
      %v436 = vpack.c.b16 %v426, %v425
      %v437 = vpack.c.b16 %v428, %v427
      %v438 = vpack.c.b16 %v430, %v429
      %447 = vmatprep.subr.bf16.mxu0 0
      %448 = vmatpush1.bf16.msra.mxu0 %v431
      %449 = vmatprep.subr.bf16.mxu0 0
      %450 = vmatpush1.bf16.msra.mxu0 %v432
      %451 = vmatprep.subr.bf16.mxu0 0
      %452 = vmatpush1.bf16.msra.mxu0 %v433
      %453 = vmatprep.subr.bf16.mxu0 0
      %454 = vmatpush1.bf16.msra.mxu0 %v434
      %455 = vmatprep.subr.bf16.mxu0 0
      %456 = vmatpush1.bf16.msra.mxu0 %v435
      %457 = vmatprep.subr.bf16.mxu0 0
      %458 = vmatpush1.bf16.msra.mxu0 %v436
      %459 = vmatprep.subr.bf16.mxu0 0
      %460 = vmatpush1.bf16.msra.mxu0 %v437
      %461 = vmatprep.subr.bf16.mxu0 0
      %462 = vmatpush1.bf16.msra.mxu0 %v438
      %463 = vmatprep.subr.bf16.mxu0 0
      %464 = vmatpush1.bf16.msra.mxu0 0
      %465 = vmatprep.subr.bf16.mxu0 0
      %466 = vmatpush1.bf16.msra.mxu0 0
      %467 = vmatprep.subr.bf16.mxu0 0
      %468 = vmatpush1.bf16.msra.mxu0 0
      %469 = vmatprep.subr.bf16.mxu0 0
      %470 = vmatpush1.bf16.msra.mxu0 0
      %471 = vmatprep.subr.bf16.mxu0 0
      %472 = vmatpush1.bf16.msra.mxu0 0
      %473 = vmatprep.subr.bf16.mxu0 0
      %474 = vmatpush1.bf16.msra.mxu0 0
      %475 = vmatprep.subr.bf16.mxu0 0
      %476 = vmatpush1.bf16.msra.mxu0 0
      %477 = vmatprep.subr.bf16.mxu0 0
      %478 = vmatpush1.bf16.msra.mxu0 0
      %479 = vmatprep.mubr.bf16.mxu0 0
      %480 = vmatmul.mubr.bf16.gmra.mrb[0].mxu0 %v391
      %v481 = vpop.f32.mrb[0].mxu0
      %v482 = vadd.f32 0.0, %v481
      %v483 = vpop.f32.mrb[0].mxu0
      %v484 = vpop.f32.mrb[0].mxu0
      %v485 = vadd.f32 0.0, %v484
      %v486 = vpop.f32.mrb[0].mxu0
      %487 = vmatprep.mubr.bf16.mxu0 0
      %488 = vmatmul.mubr.bf16.gmra.mrb[0].mxu0 %v392
      %v489 = vpop.f32.mrb[0].mxu0
      %v490 = vadd.f32 0.0, %v489
      %v491 = vpop.f32.mrb[0].mxu0
      %v492 = vpop.f32.mrb[0].mxu0
      %v493 = vadd.f32 0.0, %v492
      %v494 = vpop.f32.mrb[0].mxu0
      %495 = vmatprep.mubr.bf16.mxu0 0
      %496 = vmatmul.mubr.bf16.gmra.mrb[0].mxu0 %v393
      %v497 = vpop.f32.mrb[0].mxu0
      %v498 = vadd.f32 0.0, %v497
      %v499 = vpop.f32.mrb[0].mxu0
      %v500 = vpop.f32.mrb[0].mxu0
      %v501 = vadd.f32 0.0, %v500
      %v502 = vpop.f32.mrb[0].mxu0
      %503 = vmatprep.mubr.bf16.mxu0 0
      %504 = vmatmul.mubr.bf16.gmra.mrb[0].mxu0 %v394
      %v505 = vpop.f32.mrb[0].mxu0
      %v506 = vadd.f32 0.0, %v505
      %v507 = vpop.f32.mrb[0].mxu0
      %v508 = vpop.f32.mrb[0].mxu0
      %v509 = vadd.f32 0.0, %v508
      %v510 = vpop.f32.mrb[0].mxu0
      %511 = vdwg.mxu0
      %v512 = vld [vmem:[%s5] sm:$0x1]
      %v514 = vlaneseq
      %v515 = vshrl.u32 %v514, 7
      %v516 = vsub.s32 0, %v515
      %v517 = vrot.slane %v512, %v516
      %v519 = vmul.f32 %v482, %v517
      %v520 = vmul.f32 %v485, %v517
      %v521 = vmul.f32 %v490, %v517
      %v522 = vmul.f32 %v493, %v517
      %v523 = vmul.f32 %v498, %v517
      %v524 = vmul.f32 %v501, %v517
      %v525 = vmul.f32 %v506, %v517
      %v526 = vmul.f32 %v509, %v517
      %v527 = vadd.f32 %v343, %v519
      %v528 = vadd.f32 %v344, %v520
      %v529 = vadd.f32 %v345, %v521
      %v530 = vadd.f32 %v346, %v522
      %v531 = vadd.f32 %v347, %v523
      %v532 = vadd.f32 %v348, %v524
      %v533 = vadd.f32 %v349, %v525
      %v534 = vadd.f32 %v350, %v526
      %v535 = vld [vmem:[%s6] sm:$0x1]
      %v537 = vlaneseq
      %v538 = vshrl.u32 %v537, 7
      %v539 = vsub.s32 0, %v538
      %v540 = vrot.slane %v535, %v539
      %v542 = vadd.f32 %v527, %v540
      %v543 = vadd.f32 %v528, %v540
      %v544 = vadd.f32 %v529, %v540
      %v545 = vadd.f32 %v530, %v540
      %v546 = vadd.f32 %v531, %v540
      %v547 = vadd.f32 %v532, %v540
      %v548 = vadd.f32 %v533, %v540
      %v549 = vadd.f32 %v534, %v540
      %v550 = vmax.f32 %v542, 0.0
      %v551 = vmax.f32 %v543, 0.0
      %v552 = vmax.f32 %v544, 0.0
      %v553 = vmax.f32 %v545, 0.0
      %v554 = vmax.f32 %v546, 0.0
      %v555 = vmax.f32 %v547, 0.0
      %v556 = vmax.f32 %v548, 0.0
      %v557 = vmax.f32 %v549, 0.0
      %558 = vst [vmem:[%s302] sm:$0xff] %v550
      %559 = vst [vmem:[%s302 + $0x8] sm:$0xff] %v551
      %560 = vst [vmem:[%s302 + $0x10] sm:$0xff] %v552
      %561 = vst [vmem:[%s302 + $0x18] sm:$0xff] %v553
      %562 = vst [vmem:[%s302 + $0x20] sm:$0xff] %v554
      %563 = vst [vmem:[%s302 + $0x28] sm:$0xff] %v555
      %564 = vst [vmem:[%s302 + $0x30] sm:$0xff] %v556
      %565 = vst [vmem:[%s302 + $0x38] sm:$0xff] %v557
      %s566 = smul.u32 8, %s18
      %p567 = scmp.lt.s32.totalorder %s566, 15
      %s568 = scalar_select %p567, %s566, 15
      %s569 = smul.addr %s568, 8
      %s570 = scalar_lea.vmem %s7, %s569
      // Predicated region
      $region49: #{residual_block_forward.7} parent=47 // pred_check
        %p571 = pneg %p193
      $region50: #{residual_block_forward.7} parent=47 // pred_check_branch
        %573 = sbr.rel (%p571) target = $region52
      $region51: #{residual_block_forward.7} parent=47 // pred_region
        %s574 = smul.u32 8, %s18
      $region52: #{residual_block_forward.7} parent=47 // pred_fallthru
        _
    $region48: #{residual_block_forward.7} parent=5 // pred_fallthru
      _
    %p575 = scmp.le.s32.totalorder 2, %s13
    // Predicated region
    $region53: #{residual_block_forward.7} parent=5 // pred_check
      %p576 = pneg %p575
    $region54: #{residual_block_forward.7} parent=5 // pred_check_branch
      %578 = sbr.rel (%p576) target = $region56
    $region55: #{residual_block_forward.7} parent=5 // pred_region
      %s579 = ssub.s32 %s13, 2
      // Predicated region
      $region57: #{residual_block_forward.7} parent=55 // pred_check
        %p580 = pneg %p199
      $region58: #{residual_block_forward.7} parent=55 // pred_check_branch
        %582 = sbr.rel (%p580) target = $region60
      $region59: #{residual_block_forward.7} parent=55 // pred_region
        %s583 = smul.u32 8, %s19
        %p584 = scmp.lt.s32.totalorder %s583, 15
        %s585 = scalar_select %p584, %s583, 15
        %s586 = smul.addr %s585, 8
        %s587 = scalar_lea.vmem %s7, %s586
      $region60: #{residual_block_forward.7} parent=55 // pred_fallthru
        _
    $region56: #{residual_block_forward.7} parent=5 // pred_fallthru
      _
  $region6: #{residual_block_forward.7} parent=0 // loop_footer
    %s17 = sadd.s32 1, %s13
  $region7: #{residual_block_forward.7} parent=0 // loop_footer_branch
    %12 = sbr.rel target = $region3
  $region8: #{residual_block_forward.7} parent=0 // loop_exit
    _

</llo_original>
